<compile_context>
chip_gen: v7x
topology: tpu7x:2x2x1
jax: 0.10.0
libtpu: 0.0.40
codegen_flags: <defaults>
</compile_context>

<pallas_src>
import functools

import jax
import jax.numpy as jnp
from jax.experimental import pallas as pl
from jax.experimental.pallas import tpu as pltpu


def _round_up(x, m):
    return (x + m - 1) // m * m


def _ncf_kernel(num_mlp, *refs):
    # refs layout:
    #   u_mlp, m_mlp, u_gmf, m_gmf                     (activation tiles, bf16)
    #   w0_u, w0_m, b0                                 (first MLP layer, split)
    #   (w_i, b_i) for layers 1..num_mlp-1
    #   w_gmf, b_gmf
    #   w_neu_mlp, w_neu_gmf, b_neu                    (head, padded to 128 lanes)
    #   out_ref                                        (TB, 128) f32
    u_mlp, m_mlp, u_gmf, m_gmf = refs[0], refs[1], refs[2], refs[3]
    idx = 4

    # --- MLP tower: cat(u_mlp, m_mlp) expressed as split-weight accumulation ---
    w0_u = refs[idx][...]
    w0_m = refs[idx + 1][...]
    b0 = refs[idx + 2][...]
    idx += 3
    x = (jnp.dot(u_mlp[...], w0_u, preferred_element_type=jnp.float32)
         + jnp.dot(m_mlp[...], w0_m, preferred_element_type=jnp.float32)
         + b0)
    if num_mlp > 1:
        x = jnp.maximum(x, 0.0)
        # TODO(synk): dropout omitted (inference / training=False semantics)
    for layer in range(1, num_mlp):
        w = refs[idx][...]
        b = refs[idx + 1][...]
        idx += 2
        x = jnp.dot(x.astype(w.dtype), w, preferred_element_type=jnp.float32) + b
        if layer < num_mlp - 1:
            x = jnp.maximum(x, 0.0)

    # --- GMF tower: elementwise product -> Linear -> sigmoid ---
    w_gmf = refs[idx][...]
    b_gmf = refs[idx + 1][...]
    idx += 2
    g = u_gmf[...] * m_gmf[...]
    g = jax.nn.sigmoid(
        jnp.dot(g, w_gmf, preferred_element_type=jnp.float32) + b_gmf)

    # --- neuMF head: cat(mlp_out, gmf_out) as split-weight, 128-lane output ---
    w_neu_x = refs[idx][...]
    w_neu_g = refs[idx + 1][...]
    b_neu = refs[idx + 2][...]
    out_ref = refs[idx + 3]
    out = (jnp.dot(x.astype(w_neu_x.dtype), w_neu_x,
                   preferred_element_type=jnp.float32)
           + jnp.dot(g.astype(w_neu_g.dtype), w_neu_g,
                     preferred_element_type=jnp.float32)
           + b_neu)
    out_ref[...] = out


def ncf_forward(u, m, kp, *, block_b=256):
    """NCF forward. u, m: int32 index vectors [B]; kp: prepare_params() output."""
    B = u.shape[0]
    TB = block_b
    Bp = _round_up(max(B, 1), TB)
    pad = Bp - B
    if pad:
        u = jnp.concatenate([u, jnp.zeros((pad,), u.dtype)])
        m = jnp.concatenate([m, jnp.zeros((pad,), m.dtype)])

    # Embedding gathers (plain-JAX glue, bf16 tables -> bf16 activations).
    # TODO(synk): could be fused via PrefetchScalarGridSpec + manual DMA gather
    # to avoid materializing [Bp, D] intermediates in HBM at very large B.
    u_mlp = kp["u_mlp_emb"][u]
    m_mlp = kp["m_mlp_emb"][m]
    u_gmf = kp["u_gmf_emb"][u]
    m_gmf = kp["m_gmf_emb"][m]
    D = u_mlp.shape[1]

    inputs = [u_mlp, m_mlp, u_gmf, m_gmf]
    act_spec = pl.BlockSpec((TB, D), lambda i: (i, 0))
    in_specs = [act_spec] * 4

    weights = [kp["w0_u"], kp["w0_m"], kp["b0"]]
    for w, b in kp["mlp_rest"]:
        weights += [w, b]
    weights += [kp["gmf_w"], kp["gmf_b"],
                kp["neu_w_mlp"], kp["neu_w_gmf"], kp["neu_b"]]
    for w in weights:
        in_specs.append(pl.BlockSpec(w.shape, lambda i: (0, 0)))  # resident
    inputs += weights

    num_mlp = 1 + len(kp["mlp_rest"])
    kernel = functools.partial(_ncf_kernel, num_mlp)

    out = pl.pallas_call(
        kernel,
        out_shape=jax.ShapeDtypeStruct((Bp, 128), jnp.float32),
        grid=(Bp // TB,),
        in_specs=in_specs,
        out_specs=pl.BlockSpec((TB, 128), lambda i: (i, 0)),
        compiler_params=pltpu.CompilerParams(
            dimension_semantics=("parallel",),
            vmem_limit_bytes=32 * 1024 * 1024),
    )(*inputs)
    return out[:B, 0:1]


def init_params(key, n_users, n_items, embed_dim, mlp_hidden, gmf_hidden):
    """PyTorch-default-style init, torch layout (w: [out, in], b: [out]), f32."""
    keys = jax.random.split(key, 4 + len(mlp_hidden) + 2)
    ki = iter(keys)

    def linear(k, fan_in, fan_out):
        k1, k2 = jax.random.split(k)
        bound = 1.0 / (fan_in ** 0.5)
        w = jax.random.uniform(k1, (fan_out, fan_in), jnp.float32, -bound, bound)
        b = jax.random.uniform(k2, (fan_out,), jnp.float32, -bound, bound)
        return w, b

    raw = {
        "u_mlp_emb": jax.random.normal(next(ki), (n_users, embed_dim), jnp.float32),
        "m_mlp_emb": jax.random.normal(next(ki), (n_items, embed_dim), jnp.float32),
        "u_gmf_emb": jax.random.normal(next(ki), (n_users, embed_dim), jnp.float32),
        "m_gmf_emb": jax.random.normal(next(ki), (n_items, embed_dim), jnp.float32),
    }
    mlp = []
    in_dim = 2 * embed_dim
    for h in mlp_hidden:
        mlp.append(linear(next(ki), in_dim, h))
        in_dim = h
    raw["mlp"] = mlp
    raw["gmf_w"], raw["gmf_b"] = linear(next(ki), embed_dim, gmf_hidden)
    raw["neu_w"], raw["neu_b"] = linear(next(ki), gmf_hidden + mlp_hidden[-1], 1)
    return raw


def prepare_params(raw):
    """One-time relayout: bf16 cast, [in, out] weights, [1, out] f32 biases,
    split first-MLP / neuMF weights, pad head to 128 output lanes."""
    bf = jnp.bfloat16
    D = raw["u_mlp_emb"].shape[1]
    kp = {
        "u_mlp_emb": raw["u_mlp_emb"].astype(bf),
        "m_mlp_emb": raw["m_mlp_emb"].astype(bf),
        "u_gmf_emb": raw["u_gmf_emb"].astype(bf),
        "m_gmf_emb": raw["m_gmf_emb"].astype(bf),
    }
    w0, b0 = raw["mlp"][0]
    w0t = w0.T                                   # [2D, H0]
    kp["w0_u"] = w0t[:D].astype(bf)
    kp["w0_m"] = w0t[D:].astype(bf)
    kp["b0"] = b0[None, :].astype(jnp.float32)
    kp["mlp_rest"] = [(w.T.astype(bf), b[None, :].astype(jnp.float32))
                      for (w, b) in raw["mlp"][1:]]
    kp["gmf_w"] = raw["gmf_w"].T.astype(bf)
    kp["gmf_b"] = raw["gmf_b"][None, :].astype(jnp.float32)

    w_neu = raw["neu_w"].T                       # [H_mlp + H_gmf, 1]
    h_mlp = raw["mlp"][-1][0].shape[0]

    def pad128(w):                               # [K, 1] -> [K, 128]
        return jnp.pad(w, ((0, 0), (0, 127))).astype(bf)

    kp["neu_w_mlp"] = pad128(w_neu[:h_mlp])
    kp["neu_w_gmf"] = pad128(w_neu[h_mlp:])
    kp["neu_b"] = jnp.pad(raw["neu_b"][None, :],
                          ((0, 0), (0, 127))).astype(jnp.float32)
    return kp


def ncf_reference(u, m, raw):
    """Pure-JAX f32 reference mirroring the PyTorch module (eval mode)."""
    u_mlp = raw["u_mlp_emb"][u]
    m_mlp = raw["m_mlp_emb"][m]
    u_gmf = raw["u_gmf_emb"][u]
    m_gmf = raw["m_gmf_emb"][m]
    x = jnp.concatenate([u_mlp, m_mlp], axis=1)
    n = len(raw["mlp"])
    for i, (w, b) in enumerate(raw["mlp"]):
        x = x @ w.T + b
        if i < n - 1:
            x = jax.nn.relu(x)
    g = jax.nn.sigmoid((u_gmf * m_gmf) @ raw["gmf_w"].T + raw["gmf_b"])
    cat = jnp.concatenate([x, g], axis=1)
    return cat @ raw["neu_w"].T + raw["neu_b"]


if __name__ == "__main__":
    n_users, n_items = 50, 40
    embed_dim = 32
    mlp_hidden = [64, 32]
    gmf_hidden = 32
    batch = 8

    key = jax.random.PRNGKey(0)
    k_params, k_u, k_m = jax.random.split(key, 3)
    raw = init_params(k_params, n_users, n_items, embed_dim,
                      mlp_hidden, gmf_hidden)
    kparams = prepare_params(raw)

    u = jax.random.randint(k_u, (batch,), 0, n_users, dtype=jnp.int32)
    m = jax.random.randint(k_m, (batch,), 0, n_items, dtype=jnp.int32)

    out = ncf_forward(u, m, kparams)
    jax.block_until_ready(out)
    assert out.shape == (batch, 1), out.shape

    ref = ncf_reference(u, m, raw)
    err = float(jnp.max(jnp.abs(out - ref)))
    assert err < 1e-1, f"max abs err vs f32 reference: {err}"
    print("KERNEL_OK")
</pallas_src>

<mosaic_0001>
module attributes {stable_mosaic.version = 11 : i64} {
  func.func @_ncf_kernel(%arg0: i32, %arg1: memref<256x32xbf16, #tpu.memory_space<vmem>>, %arg2: memref<256x32xbf16, #tpu.memory_space<vmem>>, %arg3: memref<256x32xbf16, #tpu.memory_space<vmem>>, %arg4: memref<256x32xbf16, #tpu.memory_space<vmem>>, %arg5: memref<32x64xbf16, #tpu.memory_space<vmem>>, %arg6: memref<32x64xbf16, #tpu.memory_space<vmem>>, %arg7: memref<1x64xf32, #tpu.memory_space<vmem>>, %arg8: memref<64x32xbf16, #tpu.memory_space<vmem>>, %arg9: memref<1x32xf32, #tpu.memory_space<vmem>>, %arg10: memref<32x32xbf16, #tpu.memory_space<vmem>>, %arg11: memref<1x32xf32, #tpu.memory_space<vmem>>, %arg12: memref<32x128xbf16, #tpu.memory_space<vmem>>, %arg13: memref<32x128xbf16, #tpu.memory_space<vmem>>, %arg14: memref<1x128xf32, #tpu.memory_space<vmem>>, %arg15: memref<256x128xf32, #tpu.memory_space<vmem>>) attributes {dimension_semantics = [#tpu.dimension_semantics<parallel>], iteration_bounds = array<i64: 1>, scalar_prefetch = 0 : i64, scratch_operands = 0 : i64, tpu.core_type = #tpu.core_type<tc>, window_params = [{transform_indices = @transform_0, window_bounds = array<i64: 256, 32>}, {transform_indices = @transform_1, window_bounds = array<i64: 256, 32>}, {transform_indices = @transform_2, window_bounds = array<i64: 256, 32>}, {transform_indices = @transform_3, window_bounds = array<i64: 256, 32>}, {pipeline_mode = #tpu.pipeline_mode<synchronous>, transform_indices = @transform_4, window_bounds = array<i64: 32, 64>}, {pipeline_mode = #tpu.pipeline_mode<synchronous>, transform_indices = @transform_5, window_bounds = array<i64: 32, 64>}, {pipeline_mode = #tpu.pipeline_mode<synchronous>, transform_indices = @transform_6, window_bounds = array<i64: 1, 64>}, {pipeline_mode = #tpu.pipeline_mode<synchronous>, transform_indices = @transform_7, window_bounds = array<i64: 64, 32>}, {pipeline_mode = #tpu.pipeline_mode<synchronous>, transform_indices = @transform_8, window_bounds = array<i64: 1, 32>}, {pipeline_mode = #tpu.pipeline_mode<synchronous>, transform_indices = @transform_9, window_bounds = array<i64: 32, 32>}, {pipeline_mode = #tpu.pipeline_mode<synchronous>, transform_indices = @transform_10, window_bounds = array<i64: 1, 32>}, {pipeline_mode = #tpu.pipeline_mode<synchronous>, transform_indices = @transform_11, window_bounds = array<i64: 32, 128>}, {pipeline_mode = #tpu.pipeline_mode<synchronous>, transform_indices = @transform_12, window_bounds = array<i64: 32, 128>}, {pipeline_mode = #tpu.pipeline_mode<synchronous>, transform_indices = @transform_13, window_bounds = array<i64: 1, 128>}, {transform_indices = @transform_14, window_bounds = array<i64: 256, 128>}]} {
    %c0 = arith.constant 0 : index
    %c0_0 = arith.constant 0 : index
    %0 = vector.load %arg5[%c0, %c0_0] : memref<32x64xbf16, #tpu.memory_space<vmem>>, vector<32x64xbf16>
    %c0_1 = arith.constant 0 : index
    %c0_2 = arith.constant 0 : index
    %1 = vector.load %arg6[%c0_1, %c0_2] : memref<32x64xbf16, #tpu.memory_space<vmem>>, vector<32x64xbf16>
    %c0_3 = arith.constant 0 : index
    %c0_4 = arith.constant 0 : index
    %2 = vector.load %arg7[%c0_3, %c0_4] : memref<1x64xf32, #tpu.memory_space<vmem>>, vector<1x64xf32>
    %c0_5 = arith.constant 0 : index
    %c0_6 = arith.constant 0 : index
    %3 = vector.load %arg1[%c0_5, %c0_6] : memref<256x32xbf16, #tpu.memory_space<vmem>>, vector<256x32xbf16>
    %cst = arith.constant dense<0.000000e+00> : vector<256x64xf32>
    %4 = tpu.matmul %3, %0, %cst {dimension_numbers = #tpu.dot_dimension_numbers<[1], [0], [0], [1], [0, 0, 1, 1], [], []>} : vector<256x32xbf16>, vector<32x64xbf16>, vector<256x64xf32> -> vector<256x64xf32>
    %c0_7 = arith.constant 0 : index
    %c0_8 = arith.constant 0 : index
    %5 = vector.load %arg2[%c0_7, %c0_8] : memref<256x32xbf16, #tpu.memory_space<vmem>>, vector<256x32xbf16>
    %cst_9 = arith.constant dense<0.000000e+00> : vector<256x64xf32>
    %6 = tpu.matmul %5, %1, %cst_9 {dimension_numbers = #tpu.dot_dimension_numbers<[1], [0], [0], [1], [0, 0, 1, 1], [], []>} : vector<256x32xbf16>, vector<32x64xbf16>, vector<256x64xf32> -> vector<256x64xf32>
    %7 = arith.addf %4, %6 : vector<256x64xf32>
    %8 = vector.broadcast %2 : vector<1x64xf32> to vector<256x64xf32>
    %9 = arith.addf %7, %8 : vector<256x64xf32>
    %cst_10 = arith.constant 0.000000e+00 : f32
    %10 = vector.broadcast %cst_10 : f32 to vector<256x64xf32>
    %11 = arith.maximumf %9, %10 : vector<256x64xf32>
    %c0_11 = arith.constant 0 : index
    %c0_12 = arith.constant 0 : index
    %12 = vector.load %arg8[%c0_11, %c0_12] : memref<64x32xbf16, #tpu.memory_space<vmem>>, vector<64x32xbf16>
    %c0_13 = arith.constant 0 : index
    %c0_14 = arith.constant 0 : index
    %13 = vector.load %arg9[%c0_13, %c0_14] : memref<1x32xf32, #tpu.memory_space<vmem>>, vector<1x32xf32>
    %14 = arith.truncf %11 : vector<256x64xf32> to vector<256x64xbf16>
    %cst_15 = arith.constant dense<0.000000e+00> : vector<256x32xf32>
    %15 = tpu.matmul %14, %12, %cst_15 {dimension_numbers = #tpu.dot_dimension_numbers<[1], [0], [0], [1], [0, 0, 1, 1], [], []>} : vector<256x64xbf16>, vector<64x32xbf16>, vector<256x32xf32> -> vector<256x32xf32>
    %16 = vector.broadcast %13 : vector<1x32xf32> to vector<256x32xf32>
    %17 = arith.addf %15, %16 : vector<256x32xf32>
    %c0_16 = arith.constant 0 : index
    %c0_17 = arith.constant 0 : index
    %18 = vector.load %arg10[%c0_16, %c0_17] : memref<32x32xbf16, #tpu.memory_space<vmem>>, vector<32x32xbf16>
    %c0_18 = arith.constant 0 : index
    %c0_19 = arith.constant 0 : index
    %19 = vector.load %arg11[%c0_18, %c0_19] : memref<1x32xf32, #tpu.memory_space<vmem>>, vector<1x32xf32>
    %c0_20 = arith.constant 0 : index
    %c0_21 = arith.constant 0 : index
    %20 = vector.load %arg3[%c0_20, %c0_21] : memref<256x32xbf16, #tpu.memory_space<vmem>>, vector<256x32xbf16>
    %c0_22 = arith.constant 0 : index
    %c0_23 = arith.constant 0 : index
    %21 = vector.load %arg4[%c0_22, %c0_23] : memref<256x32xbf16, #tpu.memory_space<vmem>>, vector<256x32xbf16>
    %22 = arith.mulf %20, %21 : vector<256x32xbf16>
    %cst_24 = arith.constant dense<0.000000e+00> : vector<256x32xf32>
    %23 = tpu.matmul %22, %18, %cst_24 {dimension_numbers = #tpu.dot_dimension_numbers<[1], [0], [0], [1], [0, 0, 1, 1], [], []>} : vector<256x32xbf16>, vector<32x32xbf16>, vector<256x32xf32> -> vector<256x32xf32>
    %24 = vector.broadcast %19 : vector<1x32xf32> to vector<256x32xf32>
    %25 = arith.addf %23, %24 : vector<256x32xf32>
    %26 = arith.negf %25 : vector<256x32xf32>
    %27 = math.exp %26 : vector<256x32xf32>
    %cst_25 = arith.constant 1.000000e+00 : f32
    %28 = vector.broadcast %cst_25 : f32 to vector<256x32xf32>
    %29 = arith.addf %28, %27 : vector<256x32xf32>
    %30 = arith.divf %28, %29 : vector<256x32xf32>
    %c0_26 = arith.constant 0 : index
    %c0_27 = arith.constant 0 : index
    %31 = vector.load %arg12[%c0_26, %c0_27] : memref<32x128xbf16, #tpu.memory_space<vmem>>, vector<32x128xbf16>
    %c0_28 = arith.constant 0 : index
    %c0_29 = arith.constant 0 : index
    %32 = vector.load %arg13[%c0_28, %c0_29] : memref<32x128xbf16, #tpu.memory_space<vmem>>, vector<32x128xbf16>
    %c0_30 = arith.constant 0 : index
    %c0_31 = arith.constant 0 : index
    %33 = vector.load %arg14[%c0_30, %c0_31] : memref<1x128xf32, #tpu.memory_space<vmem>>, vector<1x128xf32>
    %34 = arith.truncf %17 : vector<256x32xf32> to vector<256x32xbf16>
    %cst_32 = arith.constant dense<0.000000e+00> : vector<256x128xf32>
    %35 = tpu.matmul %34, %31, %cst_32 {dimension_numbers = #tpu.dot_dimension_numbers<[1], [0], [0], [1], [0, 0, 1, 1], [], []>} : vector<256x32xbf16>, vector<32x128xbf16>, vector<256x128xf32> -> vector<256x128xf32>
    %36 = arith.truncf %30 : vector<256x32xf32> to vector<256x32xbf16>
    %cst_33 = arith.constant dense<0.000000e+00> : vector<256x128xf32>
    %37 = tpu.matmul %36, %32, %cst_33 {dimension_numbers = #tpu.dot_dimension_numbers<[1], [0], [0], [1], [0, 0, 1, 1], [], []>} : vector<256x32xbf16>, vector<32x128xbf16>, vector<256x128xf32> -> vector<256x128xf32>
    %38 = arith.addf %35, %37 : vector<256x128xf32>
    %39 = vector.broadcast %33 : vector<1x128xf32> to vector<256x128xf32>
    %40 = arith.addf %38, %39 : vector<256x128xf32>
    %c0_34 = arith.constant 0 : index
    %c0_35 = arith.constant 0 : index
    %41 = vector.load %arg15[%c0_34, %c0_35] : memref<256x128xf32, #tpu.memory_space<vmem>>, vector<256x128xf32>
    tpu.vector_store %arg15[%c0_34, %c0_35], %40 {strides = array<i32>} : memref<256x128xf32, #tpu.memory_space<vmem>>, vector<256x128xf32>,
    return
  }
  func.func @transform_0(%arg0: i32) -> (i32, i32) {
    %c0_i32 = arith.constant 0 : i32
    %c0_i32_0 = arith.constant 0 : i32
    return %arg0, %c0_i32 : i32, i32
  }
  func.func @transform_1(%arg0: i32) -> (i32, i32) {
    %c0_i32 = arith.constant 0 : i32
    %c0_i32_0 = arith.constant 0 : i32
    return %arg0, %c0_i32 : i32, i32
  }
  func.func @transform_2(%arg0: i32) -> (i32, i32) {
    %c0_i32 = arith.constant 0 : i32
    %c0_i32_0 = arith.constant 0 : i32
    return %arg0, %c0_i32 : i32, i32
  }
  func.func @transform_3(%arg0: i32) -> (i32, i32) {
    %c0_i32 = arith.constant 0 : i32
    %c0_i32_0 = arith.constant 0 : i32
    return %arg0, %c0_i32 : i32, i32
  }
  func.func @transform_4(%arg0: i32) -> (i32, i32) {
    %c0_i32 = arith.constant 0 : i32
    %c0_i32_0 = arith.constant 0 : i32
    %c0_i32_1 = arith.constant 0 : i32
    return %c0_i32, %c0_i32_0 : i32, i32
  }
  func.func @transform_5(%arg0: i32) -> (i32, i32) {
    %c0_i32 = arith.constant 0 : i32
    %c0_i32_0 = arith.constant 0 : i32
    %c0_i32_1 = arith.constant 0 : i32
    return %c0_i32, %c0_i32_0 : i32, i32
  }
  func.func @transform_6(%arg0: i32) -> (i32, i32) {
    %c0_i32 = arith.constant 0 : i32
    %c0_i32_0 = arith.constant 0 : i32
    %c0_i32_1 = arith.constant 0 : i32
    return %c0_i32, %c0_i32_0 : i32, i32
  }
  func.func @transform_7(%arg0: i32) -> (i32, i32) {
    %c0_i32 = arith.constant 0 : i32
    %c0_i32_0 = arith.constant 0 : i32
    %c0_i32_1 = arith.constant 0 : i32
    return %c0_i32, %c0_i32_0 : i32, i32
  }
  func.func @transform_8(%arg0: i32) -> (i32, i32) {
    %c0_i32 = arith.constant 0 : i32
    %c0_i32_0 = arith.constant 0 : i32
    %c0_i32_1 = arith.constant 0 : i32
    return %c0_i32, %c0_i32_0 : i32, i32
  }
  func.func @transform_9(%arg0: i32) -> (i32, i32) {
    %c0_i32 = arith.constant 0 : i32
    %c0_i32_0 = arith.constant 0 : i32
    %c0_i32_1 = arith.constant 0 : i32
    return %c0_i32, %c0_i32_0 : i32, i32
  }
  func.func @transform_10(%arg0: i32) -> (i32, i32) {
    %c0_i32 = arith.constant 0 : i32
    %c0_i32_0 = arith.constant 0 : i32
    %c0_i32_1 = arith.constant 0 : i32
    return %c0_i32, %c0_i32_0 : i32, i32
  }
  func.func @transform_11(%arg0: i32) -> (i32, i32) {
    %c0_i32 = arith.constant 0 : i32
    %c0_i32_0 = arith.constant 0 : i32
    %c0_i32_1 = arith.constant 0 : i32
    return %c0_i32, %c0_i32_0 : i32, i32
  }
  func.func @transform_12(%arg0: i32) -> (i32, i32) {
    %c0_i32 = arith.constant 0 : i32
    %c0_i32_0 = arith.constant 0 : i32
    %c0_i32_1 = arith.constant 0 : i32
    return %c0_i32, %c0_i32_0 : i32, i32
  }
  func.func @transform_13(%arg0: i32) -> (i32, i32) {
    %c0_i32 = arith.constant 0 : i32
    %c0_i32_0 = arith.constant 0 : i32
    %c0_i32_1 = arith.constant 0 : i32
    return %c0_i32, %c0_i32_0 : i32, i32
  }
  func.func @transform_14(%arg0: i32) -> (i32, i32) {
    %c0_i32 = arith.constant 0 : i32
    %c0_i32_0 = arith.constant 0 : i32
    return %arg0, %c0_i32 : i32, i32
  }
}

</mosaic_0001>

<llo_original>
// kernel: tpu_custom_call.1
$region0: #{tpu_custom_call.1}
  #allocation0 [shape = 'u32[]', space=smem, size = 0x4, offset = 0x4, fixed_abs, tag = 'smem constant byte address 0x4 - core index']
  #allocation1 [shape = 'u32[144,128]{1,0:T(1,128)}', space=vmem, size = 0x12000, scoped, tag = 'internal scratch']
  %s0 = inlined_call_operand.vmem [shape: bf16[256,32], index: 0, kind: input, shape index: {}]
  %s1 = inlined_call_operand.vmem [shape: bf16[256,32], index: 1, kind: input, shape index: {}]
  %s2 = inlined_call_operand.vmem [shape: bf16[256,32], index: 2, kind: input, shape index: {}]
  %s3 = inlined_call_operand.vmem [shape: bf16[256,32], index: 3, kind: input, shape index: {}]
  %s4 = inlined_call_operand.vmem [shape: bf16[32,64], index: 4, kind: input, shape index: {}]
  %s5 = inlined_call_operand.vmem [shape: bf16[32,64], index: 5, kind: input, shape index: {}]
  %s6 = inlined_call_operand.vmem [shape: f32[1,64], index: 6, kind: input, shape index: {}]
  %s7 = inlined_call_operand.vmem [shape: bf16[64,32], index: 7, kind: input, shape index: {}]
  %s8 = inlined_call_operand.vmem [shape: f32[1,32], index: 8, kind: input, shape index: {}]
  %s9 = inlined_call_operand.vmem [shape: bf16[32,32], index: 9, kind: input, shape index: {}]
  %s10 = inlined_call_operand.vmem [shape: f32[1,32], index: 10, kind: input, shape index: {}]
  %s11 = inlined_call_operand.vmem [shape: bf16[32,128], index: 11, kind: input, shape index: {}]
  %s12 = inlined_call_operand.vmem [shape: bf16[32,128], index: 12, kind: input, shape index: {}]
  %s13 = inlined_call_operand.vmem [shape: f32[1,128], index: 13, kind: input, shape index: {}]
  %s14 = inlined_call_operand.hbm [shape: f32[256,128], index: 14, kind: output, shape index: {}]
  %s15 = sld [smem:[#allocation0]]
  $region66: #{tpu_custom_call.1} parent=0
    _
  %s17 = ssub.s32 1, %s15
  %s18 = scalar_select 0, %s17, %s15
  $region1: #{tpu_custom_call.1} parent=0
    #allocation2 [shape = 'u8[131072]{0}', space=vmem, size = 0x20000, scoped, tag = 'output window, operand 0, single buffered']
    #allocation3 [shape = 's32[1]{0}', space=sflag, size = 0x4, scoped, tag = 'scoped memory for tpu_custom_call.1']
    %19 = vsyncpa [#allocation3], 0
    // Predicated region
    $region2: #{tpu_custom_call.1} parent=1 // pred_check
      _
    $region3: #{tpu_custom_call.1} parent=1 // pred_check_branch
      %21 = sbr.rel (0) target = $region5
    $region4: #{tpu_custom_call.1} parent=1 // pred_region
      _
    $region5: #{tpu_custom_call.1} parent=1 // pred_fallthru
      _
    // Predicated region
    $region6: #{tpu_custom_call.1} parent=1 // pred_check
      _
    $region7: #{tpu_custom_call.1} parent=1 // pred_check_branch
      %23 = sbr.rel (0) target = $region9
    $region8: #{tpu_custom_call.1} parent=1 // pred_region
      _
    $region9: #{tpu_custom_call.1} parent=1 // pred_fallthru
      _
    // Predicated region
    $region10: #{tpu_custom_call.1} parent=1 // pred_check
      _
    $region11: #{tpu_custom_call.1} parent=1 // pred_check_branch
      %25 = sbr.rel (0) target = $region13
    $region12: #{tpu_custom_call.1} parent=1 // pred_region
      _
    $region13: #{tpu_custom_call.1} parent=1 // pred_fallthru
      _
    // Predicated region
    $region14: #{tpu_custom_call.1} parent=1 // pred_check
      _
    $region15: #{tpu_custom_call.1} parent=1 // pred_check_branch
      %27 = sbr.rel (0) target = $region17
    $region16: #{tpu_custom_call.1} parent=1 // pred_region
      _
    $region17: #{tpu_custom_call.1} parent=1 // pred_fallthru
      _
    // Predicated region
    $region18: #{tpu_custom_call.1} parent=1 // pred_check
      _
    $region19: #{tpu_custom_call.1} parent=1 // pred_check_branch
      %29 = sbr.rel (0) target = $region21
    $region20: #{tpu_custom_call.1} parent=1 // pred_region
      _
    $region21: #{tpu_custom_call.1} parent=1 // pred_fallthru
      _
    // Predicated region
    $region22: #{tpu_custom_call.1} parent=1 // pred_check
      _
    $region23: #{tpu_custom_call.1} parent=1 // pred_check_branch
      %31 = sbr.rel (0) target = $region25
    $region24: #{tpu_custom_call.1} parent=1 // pred_region
      _
    $region25: #{tpu_custom_call.1} parent=1 // pred_fallthru
      _
    // Predicated region
    $region26: #{tpu_custom_call.1} parent=1 // pred_check
      _
    $region27: #{tpu_custom_call.1} parent=1 // pred_check_branch
      %33 = sbr.rel (0) target = $region29
    $region28: #{tpu_custom_call.1} parent=1 // pred_region
      _
    $region29: #{tpu_custom_call.1} parent=1 // pred_fallthru
      _
    // Predicated region
    $region30: #{tpu_custom_call.1} parent=1 // pred_check
      _
    $region31: #{tpu_custom_call.1} parent=1 // pred_check_branch
      %35 = sbr.rel (0) target = $region33
    $region32: #{tpu_custom_call.1} parent=1 // pred_region
      _
    $region33: #{tpu_custom_call.1} parent=1 // pred_fallthru
      _
    // Predicated region
    $region34: #{tpu_custom_call.1} parent=1 // pred_check
      _
    $region35: #{tpu_custom_call.1} parent=1 // pred_check_branch
      %37 = sbr.rel (0) target = $region37
    $region36: #{tpu_custom_call.1} parent=1 // pred_region
      _
    $region37: #{tpu_custom_call.1} parent=1 // pred_fallthru
      _
    // Predicated region
    $region38: #{tpu_custom_call.1} parent=1 // pred_check
      _
    $region39: #{tpu_custom_call.1} parent=1 // pred_check_branch
      %39 = sbr.rel (0) target = $region41
    $region40: #{tpu_custom_call.1} parent=1 // pred_region
      _
    $region41: #{tpu_custom_call.1} parent=1 // pred_fallthru
      _
    // Predicated region
    $region42: #{tpu_custom_call.1} parent=1 // pred_check
      _
    $region43: #{tpu_custom_call.1} parent=1 // pred_check_branch
      %41 = sbr.rel (0) target = $region45
    $region44: #{tpu_custom_call.1} parent=1 // pred_region
      _
    $region45: #{tpu_custom_call.1} parent=1 // pred_fallthru
      _
    // Predicated region
    $region46: #{tpu_custom_call.1} parent=1 // pred_check
      _
    $region47: #{tpu_custom_call.1} parent=1 // pred_check_branch
      %43 = sbr.rel (0) target = $region49
    $region48: #{tpu_custom_call.1} parent=1 // pred_region
      _
    $region49: #{tpu_custom_call.1} parent=1 // pred_fallthru
      _
    // Predicated region
    $region50: #{tpu_custom_call.1} parent=1 // pred_check
      _
    $region51: #{tpu_custom_call.1} parent=1 // pred_check_branch
      %45 = sbr.rel (0) target = $region53
    $region52: #{tpu_custom_call.1} parent=1 // pred_region
      _
    $region53: #{tpu_custom_call.1} parent=1 // pred_fallthru
      _
    // Predicated region
    $region54: #{tpu_custom_call.1} parent=1 // pred_check
      _
    $region55: #{tpu_custom_call.1} parent=1 // pred_check_branch
      %47 = sbr.rel (0) target = $region57
    $region56: #{tpu_custom_call.1} parent=1 // pred_region
      _
    $region57: #{tpu_custom_call.1} parent=1 // pred_fallthru
      _
    %v49 = vld [vmem:[%s4] sm:$0xf]
    %v50 = vld [vmem:[%s4 + $0x4] sm:$0xf]
    %v51 = vld [vmem:[%s4 + $0x8] sm:$0xf]
    %v52 = vld [vmem:[%s4 + $0xc] sm:$0xf]
    %v53 = vld [vmem:[%s5] sm:$0xf]
    %v54 = vld [vmem:[%s5 + $0x4] sm:$0xf]
    %v55 = vld [vmem:[%s5 + $0x8] sm:$0xf]
    %v56 = vld [vmem:[%s5 + $0xc] sm:$0xf]
    %v57 = vld [vmem:[%s6] sm:$0x1]
    %v58 = vld [vmem:[%s0] sm:$0xf]
    %v59 = vld [vmem:[%s0 + $0x4] sm:$0xf]
    %v60 = vld [vmem:[%s0 + $0x8] sm:$0xf]
    %v61 = vld [vmem:[%s0 + $0xc] sm:$0xf]
    %v62 = vld [vmem:[%s0 + $0x10] sm:$0xf]
    %v63 = vld [vmem:[%s0 + $0x14] sm:$0xf]
    %v64 = vld [vmem:[%s0 + $0x18] sm:$0xf]
    %v65 = vld [vmem:[%s0 + $0x1c] sm:$0xf]
    %v66 = vld [vmem:[%s0 + $0x20] sm:$0xf]
    %v67 = vld [vmem:[%s0 + $0x24] sm:$0xf]
    %v68 = vld [vmem:[%s0 + $0x28] sm:$0xf]
    %v69 = vld [vmem:[%s0 + $0x2c] sm:$0xf]
    %v70 = vld [vmem:[%s0 + $0x30] sm:$0xf]
    %v71 = vld [vmem:[%s0 + $0x34] sm:$0xf]
    %v72 = vld [vmem:[%s0 + $0x38] sm:$0xf]
    %v73 = vld [vmem:[%s0 + $0x3c] sm:$0xf]
    %v74 = vld [vmem:[%s0 + $0x40] sm:$0xf]
    %v75 = vld [vmem:[%s0 + $0x44] sm:$0xf]
    %v76 = vld [vmem:[%s0 + $0x48] sm:$0xf]
    %v77 = vld [vmem:[%s0 + $0x4c] sm:$0xf]
    %v78 = vld [vmem:[%s0 + $0x50] sm:$0xf]
    %v79 = vld [vmem:[%s0 + $0x54] sm:$0xf]
    %v80 = vld [vmem:[%s0 + $0x58] sm:$0xf]
    %v81 = vld [vmem:[%s0 + $0x5c] sm:$0xf]
    %v82 = vld [vmem:[%s0 + $0x60] sm:$0xf]
    %v83 = vld [vmem:[%s0 + $0x64] sm:$0xf]
    %v84 = vld [vmem:[%s0 + $0x68] sm:$0xf]
    %v85 = vld [vmem:[%s0 + $0x6c] sm:$0xf]
    %v86 = vld [vmem:[%s0 + $0x70] sm:$0xf]
    %v87 = vld [vmem:[%s0 + $0x74] sm:$0xf]
    %v88 = vld [vmem:[%s0 + $0x78] sm:$0xf]
    %v89 = vld [vmem:[%s0 + $0x7c] sm:$0xf]
    %v90 = vld [vmem:[%s1] sm:$0xf]
    %v91 = vld [vmem:[%s1 + $0x4] sm:$0xf]
    %v92 = vld [vmem:[%s1 + $0x8] sm:$0xf]
    %v93 = vld [vmem:[%s1 + $0xc] sm:$0xf]
    %v94 = vld [vmem:[%s1 + $0x10] sm:$0xf]
    %v95 = vld [vmem:[%s1 + $0x14] sm:$0xf]
    %v96 = vld [vmem:[%s1 + $0x18] sm:$0xf]
    %v97 = vld [vmem:[%s1 + $0x1c] sm:$0xf]
    %v98 = vld [vmem:[%s1 + $0x20] sm:$0xf]
    %v99 = vld [vmem:[%s1 + $0x24] sm:$0xf]
    %v100 = vld [vmem:[%s1 + $0x28] sm:$0xf]
    %v101 = vld [vmem:[%s1 + $0x2c] sm:$0xf]
    %v102 = vld [vmem:[%s1 + $0x30] sm:$0xf]
    %v103 = vld [vmem:[%s1 + $0x34] sm:$0xf]
    %v104 = vld [vmem:[%s1 + $0x38] sm:$0xf]
    %v105 = vld [vmem:[%s1 + $0x3c] sm:$0xf]
    %v106 = vld [vmem:[%s1 + $0x40] sm:$0xf]
    %v107 = vld [vmem:[%s1 + $0x44] sm:$0xf]
    %v108 = vld [vmem:[%s1 + $0x48] sm:$0xf]
    %v109 = vld [vmem:[%s1 + $0x4c] sm:$0xf]
    %v110 = vld [vmem:[%s1 + $0x50] sm:$0xf]
    %v111 = vld [vmem:[%s1 + $0x54] sm:$0xf]
    %v112 = vld [vmem:[%s1 + $0x58] sm:$0xf]
    %v113 = vld [vmem:[%s1 + $0x5c] sm:$0xf]
    %v114 = vld [vmem:[%s1 + $0x60] sm:$0xf]
    %v115 = vld [vmem:[%s1 + $0x64] sm:$0xf]
    %v116 = vld [vmem:[%s1 + $0x68] sm:$0xf]
    %v117 = vld [vmem:[%s1 + $0x6c] sm:$0xf]
    %v118 = vld [vmem:[%s1 + $0x70] sm:$0xf]
    %v119 = vld [vmem:[%s1 + $0x74] sm:$0xf]
    %v120 = vld [vmem:[%s1 + $0x78] sm:$0xf]
    %v121 = vld [vmem:[%s1 + $0x7c] sm:$0xf]
    %v154 = vunpack.c.l.b16 %v90
    %v155 = vunpack.c.l.b16 %v91
    %v156 = vunpack.c.l.b16 %v92
    %v157 = vunpack.c.l.b16 %v93
    %v158 = vunpack.c.l.b16 %v94
    %v159 = vunpack.c.l.b16 %v95
    %v160 = vunpack.c.l.b16 %v96
    %v161 = vunpack.c.l.b16 %v97
    %v162 = vunpack.c.l.b16 %v98
    %v163 = vunpack.c.l.b16 %v99
    %v164 = vunpack.c.l.b16 %v100
    %v165 = vunpack.c.l.b16 %v101
    %v166 = vunpack.c.l.b16 %v102
    %v167 = vunpack.c.l.b16 %v103
    %v168 = vunpack.c.l.b16 %v104
    %v169 = vunpack.c.l.b16 %v105
    %v170 = vunpack.c.l.b16 %v106
    %v171 = vunpack.c.l.b16 %v107
    %v172 = vunpack.c.l.b16 %v108
    %v173 = vunpack.c.l.b16 %v109
    %v174 = vunpack.c.l.b16 %v110
    %v175 = vunpack.c.l.b16 %v111
    %v176 = vunpack.c.l.b16 %v112
    %v177 = vunpack.c.l.b16 %v113
    %v178 = vunpack.c.l.b16 %v114
    %v179 = vunpack.c.l.b16 %v115
    %v180 = vunpack.c.l.b16 %v116
    %v181 = vunpack.c.l.b16 %v117
    %v182 = vunpack.c.l.b16 %v118
    %v183 = vunpack.c.l.b16 %v119
    %v184 = vunpack.c.l.b16 %v120
    %v185 = vunpack.c.l.b16 %v121
    %v186 = vpack.c.b16 %v155, %v154
    %v187 = vpack.c.b16 %v157, %v156
    %v188 = vpack.c.b16 %v159, %v158
    %v189 = vpack.c.b16 %v161, %v160
    %v190 = vpack.c.b16 %v163, %v162
    %v191 = vpack.c.b16 %v165, %v164
    %v192 = vpack.c.b16 %v167, %v166
    %v193 = vpack.c.b16 %v169, %v168
    %v194 = vpack.c.b16 %v171, %v170
    %v195 = vpack.c.b16 %v173, %v172
    %v196 = vpack.c.b16 %v175, %v174
    %v197 = vpack.c.b16 %v177, %v176
    %v198 = vpack.c.b16 %v179, %v178
    %v199 = vpack.c.b16 %v181, %v180
    %v200 = vpack.c.b16 %v183, %v182
    %v201 = vpack.c.b16 %v185, %v184
    %v206 = vunpack.c.l.b16 %v53
    %v207 = vunpack.c.l.b16 %v54
    %v208 = vunpack.c.l.b16 %v55
    %v209 = vunpack.c.l.b16 %v56
    %v210 = vpack.c.b16 %v207, %v206
    %v211 = vpack.c.b16 %v209, %v208
    %vm214 = vcmask 261120
    %v216 = vsel %vm214, %v186, 0
    %v219 = vsel %vm214, %v187, 0
    %v222 = vsel %vm214, %v188, 0
    %v225 = vsel %vm214, %v189, 0
    %v228 = vsel %vm214, %v190, 0
    %v231 = vsel %vm214, %v191, 0
    %v234 = vsel %vm214, %v192, 0
    %v237 = vsel %vm214, %v193, 0
    %v240 = vsel %vm214, %v194, 0
    %v243 = vsel %vm214, %v195, 0
    %v246 = vsel %vm214, %v196, 0
    %v249 = vsel %vm214, %v197, 0
    %v252 = vsel %vm214, %v198, 0
    %v255 = vsel %vm214, %v199, 0
    %v258 = vsel %vm214, %v200, 0
    %v261 = vsel %vm214, %v201, 0
    %263 = vmatprep.subr.bf16.mxu0 0
    %264 = vmatpush1.bf16.msra.mxu0 %v210
    %265 = vmatprep.subr.bf16.mxu0 0
    %266 = vmatpush1.bf16.msra.mxu0 %v211
    %267 = vmatprep.subr.bf16.mxu0 0
    %268 = vmatpush1.bf16.msra.mxu0 0
    %269 = vmatprep.subr.bf16.mxu0 0
    %270 = vmatpush1.bf16.msra.mxu0 0
    %271 = vmatprep.subr.bf16.mxu0 0
    %272 = vmatpush1.bf16.msra.mxu0 0
    %273 = vmatprep.subr.bf16.mxu0 0
    %274 = vmatpush1.bf16.msra.mxu0 0
    %275 = vmatprep.subr.bf16.mxu0 0
    %276 = vmatpush1.bf16.msra.mxu0 0
    %277 = vmatprep.subr.bf16.mxu0 0
    %278 = vmatpush1.bf16.msra.mxu0 0
    %279 = vmatprep.subr.bf16.mxu0 0
    %280 = vmatpush1.bf16.msra.mxu0 0
    %281 = vmatprep.subr.bf16.mxu0 0
    %282 = vmatpush1.bf16.msra.mxu0 0
    %283 = vmatprep.subr.bf16.mxu0 0
    %284 = vmatpush1.bf16.msra.mxu0 0
    %285 = vmatprep.subr.bf16.mxu0 0
    %286 = vmatpush1.bf16.msra.mxu0 0
    %287 = vmatprep.subr.bf16.mxu0 0
    %288 = vmatpush1.bf16.msra.mxu0 0
    %289 = vmatprep.subr.bf16.mxu0 0
    %290 = vmatpush1.bf16.msra.mxu0 0
    %291 = vmatprep.subr.bf16.mxu0 0
    %292 = vmatpush1.bf16.msra.mxu0 0
    %293 = vmatprep.subr.bf16.mxu0 0
    %294 = vmatpush1.bf16.msra.mxu0 0
    %295 = vmatprep.mubr.bf16.mxu0 0
    %296 = vmatmul.mubr.bf16.gmra.mrb[0].mxu0 %v216
    %v297 = vpop.f32.mrb[0].mxu0
    %v298 = vadd.f32 0.0, %v297
    %v299 = vpop.f32.mrb[0].mxu0
    %v300 = vpop.f32.mrb[0].mxu0
    %v301 = vadd.f32 0.0, %v300
    %v302 = vpop.f32.mrb[0].mxu0
    %303 = vmatprep.mubr.bf16.mxu0 0
    %304 = vmatmul.mubr.bf16.gmra.mrb[0].mxu0 %v219
    %v305 = vpop.f32.mrb[0].mxu0
    %v306 = vadd.f32 0.0, %v305
    %v307 = vpop.f32.mrb[0].mxu0
    %v308 = vpop.f32.mrb[0].mxu0
    %v309 = vadd.f32 0.0, %v308
    %v310 = vpop.f32.mrb[0].mxu0
    %311 = vmatprep.mubr.bf16.mxu0 0
    %312 = vmatmul.mubr.bf16.gmra.mrb[0].mxu0 %v222
    %v313 = vpop.f32.mrb[0].mxu0
    %v314 = vadd.f32 0.0, %v313
    %v315 = vpop.f32.mrb[0].mxu0
    %v316 = vpop.f32.mrb[0].mxu0
    %v317 = vadd.f32 0.0, %v316
    %v318 = vpop.f32.mrb[0].mxu0
    %319 = vmatprep.mubr.bf16.mxu0 0
    %320 = vmatmul.mubr.bf16.gmra.mrb[0].mxu0 %v225
    %v321 = vpop.f32.mrb[0].mxu0
    %v322 = vadd.f32 0.0, %v321
    %v323 = vpop.f32.mrb[0].mxu0
    %v324 = vpop.f32.mrb[0].mxu0
    %v325 = vadd.f32 0.0, %v324
    %v326 = vpop.f32.mrb[0].mxu0
    %327 = vmatprep.mubr.bf16.mxu0 0
    %328 = vmatmul.mubr.bf16.gmra.mrb[0].mxu0 %v228
    %v329 = vpop.f32.mrb[0].mxu0
    %v330 = vadd.f32 0.0, %v329
    %v331 = vpop.f32.mrb[0].mxu0
    %v332 = vpop.f32.mrb[0].mxu0
    %v333 = vadd.f32 0.0, %v332
    %v334 = vpop.f32.mrb[0].mxu0
    %335 = vmatprep.mubr.bf16.mxu0 0
    %336 = vmatmul.mubr.bf16.gmra.mrb[0].mxu0 %v231
    %v337 = vpop.f32.mrb[0].mxu0
    %v338 = vadd.f32 0.0, %v337
    %v339 = vpop.f32.mrb[0].mxu0
    %v340 = vpop.f32.mrb[0].mxu0
    %v341 = vadd.f32 0.0, %v340
    %v342 = vpop.f32.mrb[0].mxu0
    %343 = vmatprep.mubr.bf16.mxu0 0
    %344 = vmatmul.mubr.bf16.gmra.mrb[0].mxu0 %v234
    %v345 = vpop.f32.mrb[0].mxu0
    %v346 = vadd.f32 0.0, %v345
    %v347 = vpop.f32.mrb[0].mxu0
    %v348 = vpop.f32.mrb[0].mxu0
    %v349 = vadd.f32 0.0, %v348
    %v350 = vpop.f32.mrb[0].mxu0
    %351 = vmatprep.mubr.bf16.mxu0 0
    %352 = vmatmul.mubr.bf16.gmra.mrb[0].mxu0 %v237
    %v353 = vpop.f32.mrb[0].mxu0
    %v354 = vadd.f32 0.0, %v353
    %v355 = vpop.f32.mrb[0].mxu0
    %v356 = vpop.f32.mrb[0].mxu0
    %v357 = vadd.f32 0.0, %v356
    %v358 = vpop.f32.mrb[0].mxu0
    %359 = vmatprep.mubr.bf16.mxu0 0
    %360 = vmatmul.mubr.bf16.gmra.mrb[0].mxu0 %v240
    %v361 = vpop.f32.mrb[0].mxu0
    %v362 = vadd.f32 0.0, %v361
    %v363 = vpop.f32.mrb[0].mxu0
    %v364 = vpop.f32.mrb[0].mxu0
    %v365 = vadd.f32 0.0, %v364
    %v366 = vpop.f32.mrb[0].mxu0
    %367 = vmatprep.mubr.bf16.mxu0 0
    %368 = vmatmul.mubr.bf16.gmra.mrb[0].mxu0 %v243
    %v369 = vpop.f32.mrb[0].mxu0
    %v370 = vadd.f32 0.0, %v369
    %v371 = vpop.f32.mrb[0].mxu0
    %v372 = vpop.f32.mrb[0].mxu0
    %v373 = vadd.f32 0.0, %v372
    %v374 = vpop.f32.mrb[0].mxu0
    %375 = vmatprep.mubr.bf16.mxu0 0
    %376 = vmatmul.mubr.bf16.gmra.mrb[0].mxu0 %v246
    %v377 = vpop.f32.mrb[0].mxu0
    %v378 = vadd.f32 0.0, %v377
    %v379 = vpop.f32.mrb[0].mxu0
    %v380 = vpop.f32.mrb[0].mxu0
    %v381 = vadd.f32 0.0, %v380
    %v382 = vpop.f32.mrb[0].mxu0
    %383 = vmatprep.mubr.bf16.mxu0 0
    %384 = vmatmul.mubr.bf16.gmra.mrb[0].mxu0 %v249
    %v385 = vpop.f32.mrb[0].mxu0
    %v386 = vadd.f32 0.0, %v385
    %v387 = vpop.f32.mrb[0].mxu0
    %v388 = vpop.f32.mrb[0].mxu0
    %v389 = vadd.f32 0.0, %v388
    %v390 = vpop.f32.mrb[0].mxu0
    %391 = vmatprep.mubr.bf16.mxu0 0
    %392 = vmatmul.mubr.bf16.gmra.mrb[0].mxu0 %v252
    %v393 = vpop.f32.mrb[0].mxu0
    %v394 = vadd.f32 0.0, %v393
    %v395 = vpop.f32.mrb[0].mxu0
    %v396 = vpop.f32.mrb[0].mxu0
    %v397 = vadd.f32 0.0, %v396
    %v398 = vpop.f32.mrb[0].mxu0
    %399 = vmatprep.mubr.bf16.mxu0 0
    %400 = vmatmul.mubr.bf16.gmra.mrb[0].mxu0 %v255
    %v401 = vpop.f32.mrb[0].mxu0
    %v402 = vadd.f32 0.0, %v401
    %v403 = vpop.f32.mrb[0].mxu0
    %v404 = vpop.f32.mrb[0].mxu0
    %v405 = vadd.f32 0.0, %v404
    %v406 = vpop.f32.mrb[0].mxu0
    %407 = vmatprep.mubr.bf16.mxu0 0
    %408 = vmatmul.mubr.bf16.gmra.mrb[0].mxu0 %v258
    %v409 = vpop.f32.mrb[0].mxu0
    %v410 = vadd.f32 0.0, %v409
    %v411 = vpop.f32.mrb[0].mxu0
    %v412 = vpop.f32.mrb[0].mxu0
    %v413 = vadd.f32 0.0, %v412
    %v414 = vpop.f32.mrb[0].mxu0
    %415 = vmatprep.mubr.bf16.mxu0 0
    %416 = vmatmul.mubr.bf16.gmra.mrb[0].mxu0 %v261
    %v417 = vpop.f32.mrb[0].mxu0
    %v418 = vadd.f32 0.0, %v417
    %v419 = vpop.f32.mrb[0].mxu0
    %v420 = vpop.f32.mrb[0].mxu0
    %v421 = vadd.f32 0.0, %v420
    %v422 = vpop.f32.mrb[0].mxu0
    %423 = vdwg.mxu0
    %v456 = vunpack.c.l.b16 %v58
    %v457 = vunpack.c.l.b16 %v59
    %v458 = vunpack.c.l.b16 %v60
    %v459 = vunpack.c.l.b16 %v61
    %v460 = vunpack.c.l.b16 %v62
    %v461 = vunpack.c.l.b16 %v63
    %v462 = vunpack.c.l.b16 %v64
    %v463 = vunpack.c.l.b16 %v65
    %v464 = vunpack.c.l.b16 %v66
    %v465 = vunpack.c.l.b16 %v67
    %v466 = vunpack.c.l.b16 %v68
    %v467 = vunpack.c.l.b16 %v69
    %v468 = vunpack.c.l.b16 %v70
    %v469 = vunpack.c.l.b16 %v71
    %v470 = vunpack.c.l.b16 %v72
    %v471 = vunpack.c.l.b16 %v73
    %v472 = vunpack.c.l.b16 %v74
    %v473 = vunpack.c.l.b16 %v75
    %v474 = vunpack.c.l.b16 %v76
    %v475 = vunpack.c.l.b16 %v77
    %v476 = vunpack.c.l.b16 %v78
    %v477 = vunpack.c.l.b16 %v79
    %v478 = vunpack.c.l.b16 %v80
    %v479 = vunpack.c.l.b16 %v81
    %v480 = vunpack.c.l.b16 %v82
    %v481 = vunpack.c.l.b16 %v83
    %v482 = vunpack.c.l.b16 %v84
    %v483 = vunpack.c.l.b16 %v85
    %v484 = vunpack.c.l.b16 %v86
    %v485 = vunpack.c.l.b16 %v87
    %v486 = vunpack.c.l.b16 %v88
    %v487 = vunpack.c.l.b16 %v89
    %v488 = vpack.c.b16 %v457, %v456
    %v489 = vpack.c.b16 %v459, %v458
    %v490 = vpack.c.b16 %v461, %v460
    %v491 = vpack.c.b16 %v463, %v462
    %v492 = vpack.c.b16 %v465, %v464
    %v493 = vpack.c.b16 %v467, %v466
    %v494 = vpack.c.b16 %v469, %v468
    %v495 = vpack.c.b16 %v471, %v470
    %v496 = vpack.c.b16 %v473, %v472
    %v497 = vpack.c.b16 %v475, %v474
    %v498 = vpack.c.b16 %v477, %v476
    %v499 = vpack.c.b16 %v479, %v478
    %v500 = vpack.c.b16 %v481, %v480
    %v501 = vpack.c.b16 %v483, %v482
    %v502 = vpack.c.b16 %v485, %v484
    %v503 = vpack.c.b16 %v487, %v486
    %v508 = vunpack.c.l.b16 %v49
    %v509 = vunpack.c.l.b16 %v50
    %v510 = vunpack.c.l.b16 %v51
    %v511 = vunpack.c.l.b16 %v52
    %v512 = vpack.c.b16 %v509, %v508
    %v513 = vpack.c.b16 %v511, %v510
    %v517 = vsel %vm214, %v488, 0
    %v520 = vsel %vm214, %v489, 0
    %v523 = vsel %vm214, %v490, 0
    %v526 = vsel %vm214, %v491, 0
    %v529 = vsel %vm214, %v492, 0
    %v532 = vsel %vm214, %v493, 0
    %v535 = vsel %vm214, %v494, 0
    %v538 = vsel %vm214, %v495, 0
    %v541 = vsel %vm214, %v496, 0
    %v544 = vsel %vm214, %v497, 0
    %v547 = vsel %vm214, %v498, 0
    %v550 = vsel %vm214, %v499, 0
    %v553 = vsel %vm214, %v500, 0
    %v556 = vsel %vm214, %v501, 0
    %v559 = vsel %vm214, %v502, 0
    %v562 = vsel %vm214, %v503, 0
    %564 = vmatprep.subr.bf16.mxu0 0
    %565 = vmatpush1.bf16.msra.mxu0 %v512
    %566 = vmatprep.subr.bf16.mxu0 0
    %567 = vmatpush1.bf16.msra.mxu0 %v513
    %568 = vmatprep.subr.bf16.mxu0 0
    %569 = vmatpush1.bf16.msra.mxu0 0
    %570 = vmatprep.subr.bf16.mxu0 0
    %571 = vmatpush1.bf16.msra.mxu0 0
    %572 = vmatprep.subr.bf16.mxu0 0
    %573 = vmatpush1.bf16.msra.mxu0 0
    %574 = vmatprep.subr.bf16.mxu0 0
    %575 = vmatpush1.bf16.msra.mxu0 0
    %576 = vmatprep.subr.bf16.mxu0 0
    %577 = vmatpush1.bf16.msra.mxu0 0
    %578 = vmatprep.subr.bf16.mxu0 0
    %579 = vmatpush1.bf16.msra.mxu0 0
    %580 = vmatprep.subr.bf16.mxu0 0
    %581 = vmatpush1.bf16.msra.mxu0 0
    %582 = vmatprep.subr.bf16.mxu0 0
    %583 = vmatpush1.bf16.msra.mxu0 0
    %584 = vmatprep.subr.bf16.mxu0 0
    %585 = vmatpush1.bf16.msra.mxu0 0
    %586 = vmatprep.subr.bf16.mxu0 0
    %587 = vmatpush1.bf16.msra.mxu0 0
    %588 = vmatprep.subr.bf16.mxu0 0
    %589 = vmatpush1.bf16.msra.mxu0 0
    %590 = vmatprep.subr.bf16.mxu0 0
    %591 = vmatpush1.bf16.msra.mxu0 0
    %592 = vmatprep.subr.bf16.mxu0 0
    %593 = vmatpush1.bf16.msra.mxu0 0
    %594 = vmatprep.subr.bf16.mxu0 0
    %595 = vmatpush1.bf16.msra.mxu0 0
    %596 = vmatprep.mubr.bf16.mxu0 0
    %597 = vmatmul.mubr.bf16.gmra.mrb[0].mxu0 %v517
    %v598 = vpop.f32.mrb[0].mxu0
    %v599 = vadd.f32 %v298, %v598
    %v600 = vpop.f32.mrb[0].mxu0
    %v601 = vpop.f32.mrb[0].mxu0
    %v602 = vadd.f32 %v301, %v601
    %v603 = vpop.f32.mrb[0].mxu0
    %604 = vmatprep.mubr.bf16.mxu0 0
    %605 = vmatmul.mubr.bf16.gmra.mrb[0].mxu0 %v520
    %v606 = vpop.f32.mrb[0].mxu0
    %v607 = vadd.f32 %v306, %v606
    %v608 = vpop.f32.mrb[0].mxu0
    %v609 = vpop.f32.mrb[0].mxu0
    %v610 = vadd.f32 %v309, %v609
    %v611 = vpop.f32.mrb[0].mxu0
    %612 = vmatprep.mubr.bf16.mxu0 0
    %613 = vmatmul.mubr.bf16.gmra.mrb[0].mxu0 %v523
    %v614 = vpop.f32.mrb[0].mxu0
    %v615 = vadd.f32 %v314, %v614
    %v616 = vpop.f32.mrb[0].mxu0
    %v617 = vpop.f32.mrb[0].mxu0
    %v618 = vadd.f32 %v317, %v617
    %v619 = vpop.f32.mrb[0].mxu0
    %620 = vmatprep.mubr.bf16.mxu0 0
    %621 = vmatmul.mubr.bf16.gmra.mrb[0].mxu0 %v526
    %v622 = vpop.f32.mrb[0].mxu0
    %v623 = vadd.f32 %v322, %v622
    %v624 = vpop.f32.mrb[0].mxu0
    %v625 = vpop.f32.mrb[0].mxu0
    %v626 = vadd.f32 %v325, %v625
    %v627 = vpop.f32.mrb[0].mxu0
    %628 = vmatprep.mubr.bf16.mxu0 0
    %629 = vmatmul.mubr.bf16.gmra.mrb[0].mxu0 %v529
    %v630 = vpop.f32.mrb[0].mxu0
    %v631 = vadd.f32 %v330, %v630
    %v632 = vpop.f32.mrb[0].mxu0
    %v633 = vpop.f32.mrb[0].mxu0
    %v634 = vadd.f32 %v333, %v633
    %v635 = vpop.f32.mrb[0].mxu0
    %636 = vmatprep.mubr.bf16.mxu0 0
    %637 = vmatmul.mubr.bf16.gmra.mrb[0].mxu0 %v532
    %v638 = vpop.f32.mrb[0].mxu0
    %v639 = vadd.f32 %v338, %v638
    %v640 = vpop.f32.mrb[0].mxu0
    %v641 = vpop.f32.mrb[0].mxu0
    %v642 = vadd.f32 %v341, %v641
    %v643 = vpop.f32.mrb[0].mxu0
    %644 = vmatprep.mubr.bf16.mxu0 0
    %645 = vmatmul.mubr.bf16.gmra.mrb[0].mxu0 %v535
    %v646 = vpop.f32.mrb[0].mxu0
    %v647 = vadd.f32 %v346, %v646
    %v648 = vpop.f32.mrb[0].mxu0
    %v649 = vpop.f32.mrb[0].mxu0
    %v650 = vadd.f32 %v349, %v649
    %v651 = vpop.f32.mrb[0].mxu0
    %652 = vmatprep.mubr.bf16.mxu0 0
    %653 = vmatmul.mubr.bf16.gmra.mrb[0].mxu0 %v538
    %v654 = vpop.f32.mrb[0].mxu0
    %v655 = vadd.f32 %v354, %v654
    %v656 = vpop.f32.mrb[0].mxu0
    %v657 = vpop.f32.mrb[0].mxu0
    %v658 = vadd.f32 %v357, %v657
    %v659 = vpop.f32.mrb[0].mxu0
    %660 = vmatprep.mubr.bf16.mxu0 0
    %661 = vmatmul.mubr.bf16.gmra.mrb[0].mxu0 %v541
    %v662 = vpop.f32.mrb[0].mxu0
    %v663 = vadd.f32 %v362, %v662
    %v664 = vpop.f32.mrb[0].mxu0
    %v665 = vpop.f32.mrb[0].mxu0
    %v666 = vadd.f32 %v365, %v665
    %v667 = vpop.f32.mrb[0].mxu0
    %668 = vmatprep.mubr.bf16.mxu0 0
    %669 = vmatmul.mubr.bf16.gmra.mrb[0].mxu0 %v544
    %v670 = vpop.f32.mrb[0].mxu0
    %v671 = vadd.f32 %v370, %v670
    %v672 = vpop.f32.mrb[0].mxu0
    %v673 = vpop.f32.mrb[0].mxu0
    %v674 = vadd.f32 %v373, %v673
    %v675 = vpop.f32.mrb[0].mxu0
    %676 = vmatprep.mubr.bf16.mxu0 0
    %677 = vmatmul.mubr.bf16.gmra.mrb[0].mxu0 %v547
    %v678 = vpop.f32.mrb[0].mxu0
    %v679 = vadd.f32 %v378, %v678
    %v680 = vpop.f32.mrb[0].mxu0
    %v681 = vpop.f32.mrb[0].mxu0
    %v682 = vadd.f32 %v381, %v681
    %v683 = vpop.f32.mrb[0].mxu0
    %684 = vmatprep.mubr.bf16.mxu0 0
    %685 = vmatmul.mubr.bf16.gmra.mrb[0].mxu0 %v550
    %v686 = vpop.f32.mrb[0].mxu0
    %v687 = vadd.f32 %v386, %v686
    %v688 = vpop.f32.mrb[0].mxu0
    %v689 = vpop.f32.mrb[0].mxu0
    %v690 = vadd.f32 %v389, %v689
    %v691 = vpop.f32.mrb[0].mxu0
    %692 = vmatprep.mubr.bf16.mxu0 0
    %693 = vmatmul.mubr.bf16.gmra.mrb[0].mxu0 %v553
    %v694 = vpop.f32.mrb[0].mxu0
    %v695 = vadd.f32 %v394, %v694
    %v696 = vpop.f32.mrb[0].mxu0
    %v697 = vpop.f32.mrb[0].mxu0
    %v698 = vadd.f32 %v397, %v697
    %v699 = vpop.f32.mrb[0].mxu0
    %700 = vmatprep.mubr.bf16.mxu0 0
    %701 = vmatmul.mubr.bf16.gmra.mrb[0].mxu0 %v556
    %v702 = vpop.f32.mrb[0].mxu0
    %v703 = vadd.f32 %v402, %v702
    %v704 = vpop.f32.mrb[0].mxu0
    %v705 = vpop.f32.mrb[0].mxu0
    %v706 = vadd.f32 %v405, %v705
    %v707 = vpop.f32.mrb[0].mxu0
    %708 = vmatprep.mubr.bf16.mxu0 0
    %709 = vmatmul.mubr.bf16.gmra.mrb[0].mxu0 %v559
    %v710 = vpop.f32.mrb[0].mxu0
    %v711 = vadd.f32 %v410, %v710
    %v712 = vpop.f32.mrb[0].mxu0
    %v713 = vpop.f32.mrb[0].mxu0
    %v714 = vadd.f32 %v413, %v713
    %v715 = vpop.f32.mrb[0].mxu0
    %716 = vmatprep.mubr.bf16.mxu0 0
    %717 = vmatmul.mubr.bf16.gmra.mrb[0].mxu0 %v562
    %v718 = vpop.f32.mrb[0].mxu0
    %v719 = vadd.f32 %v418, %v718
    %v720 = vpop.f32.mrb[0].mxu0
    %v721 = vpop.f32.mrb[0].mxu0
    %v722 = vadd.f32 %v421, %v721
    %v723 = vpop.f32.mrb[0].mxu0
    %724 = vdwg.mxu0
    %v726 = vlaneseq
    %v727 = vshrl.u32 %v726, 7
    %v728 = vsub.s32 0, %v727
    %v729 = vrot.slane %v57, %v728
    %v731 = vadd.f32 %v599, %v729
    %v732 = vadd.f32 %v602, %v729
    %v733 = vadd.f32 %v607, %v729
    %v734 = vadd.f32 %v610, %v729
    %v735 = vadd.f32 %v615, %v729
    %v736 = vadd.f32 %v618, %v729
    %v737 = vadd.f32 %v623, %v729
    %v738 = vadd.f32 %v626, %v729
    %v739 = vadd.f32 %v631, %v729
    %v740 = vadd.f32 %v634, %v729
    %v741 = vadd.f32 %v639, %v729
    %v742 = vadd.f32 %v642, %v729
    %v743 = vadd.f32 %v647, %v729
    %v744 = vadd.f32 %v650, %v729
    %v745 = vadd.f32 %v655, %v729
    %v746 = vadd.f32 %v658, %v729
    %v747 = vadd.f32 %v663, %v729
    %v748 = vadd.f32 %v666, %v729
    %v749 = vadd.f32 %v671, %v729
    %v750 = vadd.f32 %v674, %v729
    %v751 = vadd.f32 %v679, %v729
    %v752 = vadd.f32 %v682, %v729
    %v753 = vadd.f32 %v687, %v729
    %v754 = vadd.f32 %v690, %v729
    %v755 = vadd.f32 %v695, %v729
    %v756 = vadd.f32 %v698, %v729
    %v757 = vadd.f32 %v703, %v729
    %v758 = vadd.f32 %v706, %v729
    %v759 = vadd.f32 %v711, %v729
    %v760 = vadd.f32 %v714, %v729
    %v761 = vadd.f32 %v719, %v729
    %v762 = vadd.f32 %v722, %v729
    %v763 = vmax.f32 %v731, 0.0
    %v764 = vmax.f32 %v732, 0.0
    %v765 = vmax.f32 %v733, 0.0
    %v766 = vmax.f32 %v734, 0.0
    %v767 = vmax.f32 %v735, 0.0
    %v768 = vmax.f32 %v736, 0.0
    %v769 = vmax.f32 %v737, 0.0
    %v770 = vmax.f32 %v738, 0.0
    %v771 = vmax.f32 %v739, 0.0
    %v772 = vmax.f32 %v740, 0.0
    %v773 = vmax.f32 %v741, 0.0
    %v774 = vmax.f32 %v742, 0.0
    %v775 = vmax.f32 %v743, 0.0
    %v776 = vmax.f32 %v744, 0.0
    %v777 = vmax.f32 %v745, 0.0
    %v778 = vmax.f32 %v746, 0.0
    %v779 = vmax.f32 %v747, 0.0
    %v780 = vmax.f32 %v748, 0.0
    %v781 = vmax.f32 %v749, 0.0
    %v782 = vmax.f32 %v750, 0.0
    %v783 = vmax.f32 %v751, 0.0
    %v784 = vmax.f32 %v752, 0.0
    %v785 = vmax.f32 %v753, 0.0
    %v786 = vmax.f32 %v754, 0.0
    %v787 = vmax.f32 %v755, 0.0
    %v788 = vmax.f32 %v756, 0.0
    %v789 = vmax.f32 %v757, 0.0
    %v790 = vmax.f32 %v758, 0.0
    %v791 = vmax.f32 %v759, 0.0
    %v792 = vmax.f32 %v760, 0.0
    %v793 = vmax.f32 %v761, 0.0
    %v794 = vmax.f32 %v762, 0.0
    %v795 = vld [vmem:[%s7] sm:$0xf]
    %v796 = vld [vmem:[%s7 + $0x4] sm:$0xf]
    %v797 = vld [vmem:[%s7 + $0x8] sm:$0xf]
    %v798 = vld [vmem:[%s7 + $0xc] sm:$0xf]
    %v799 = vld [vmem:[%s7 + $0x10] sm:$0xf]
    %v800 = vld [vmem:[%s7 + $0x14] sm:$0xf]
    %v801 = vld [vmem:[%s7 + $0x18] sm:$0xf]
    %v802 = vld [vmem:[%s7 + $0x1c] sm:$0xf]
    %v803 = vld [vmem:[%s8] sm:$0x1]
    %v804 = vpack.c.bf16 %v764, %v763
    %v805 = vpack.c.bf16 %v766, %v765
    %v806 = vpack.c.bf16 %v768, %v767
    %v807 = vpack.c.bf16 %v770, %v769
    %v808 = vpack.c.bf16 %v772, %v771
    %v809 = vpack.c.bf16 %v774, %v773
    %v810 = vpack.c.bf16 %v776, %v775
    %v811 = vpack.c.bf16 %v778, %v777
    %v812 = vpack.c.bf16 %v780, %v779
    %v813 = vpack.c.bf16 %v782, %v781
    %v814 = vpack.c.bf16 %v784, %v783
    %v815 = vpack.c.bf16 %v786, %v785
    %v816 = vpack.c.bf16 %v788, %v787
    %v817 = vpack.c.bf16 %v790, %v789
    %v818 = vpack.c.bf16 %v792, %v791
    %v819 = vpack.c.bf16 %v794, %v793
    %v821 = vlaneseq
    %v822 = vshrl.u32 %v821, 7
    %v823 = vsub.s32 0, %v822
    %v824 = vrot.slane %v803, %v823
    %v834 = vunpack.c.l.b16 %v795
    %v835 = vunpack.c.l.b16 %v796
    %v836 = vunpack.c.l.b16 %v797
    %v837 = vunpack.c.l.b16 %v798
    %v838 = vunpack.c.l.b16 %v799
    %v839 = vunpack.c.l.b16 %v800
    %v840 = vunpack.c.l.b16 %v801
    %v841 = vunpack.c.l.b16 %v802
    %v842 = vpack.c.b16 %v835, %v834
    %v843 = vpack.c.b16 %v837, %v836
    %v844 = vpack.c.b16 %v839, %v838
    %v845 = vpack.c.b16 %v841, %v840
    %vm850 = vcmask 523264
    %v852 = vsel %vm850, %v804, 0
    %v855 = vsel %vm850, %v805, 0
    %v858 = vsel %vm850, %v806, 0
    %v861 = vsel %vm850, %v807, 0
    %v864 = vsel %vm850, %v808, 0
    %v867 = vsel %vm850, %v809, 0
    %v870 = vsel %vm850, %v810, 0
    %v873 = vsel %vm850, %v811, 0
    %v876 = vsel %vm850, %v812, 0
    %v879 = vsel %vm850, %v813, 0
    %v882 = vsel %vm850, %v814, 0
    %v885 = vsel %vm850, %v815, 0
    %v888 = vsel %vm850, %v816, 0
    %v891 = vsel %vm850, %v817, 0
    %v894 = vsel %vm850, %v818, 0
    %v897 = vsel %vm850, %v819, 0
    %899 = vmatprep.subr.bf16.mxu0 0
    %900 = vmatpush1.bf16.msra.mxu0 %v842
    %901 = vmatprep.subr.bf16.mxu0 0
    %902 = vmatpush1.bf16.msra.mxu0 %v843
    %903 = vmatprep.subr.bf16.mxu0 0
    %904 = vmatpush1.bf16.msra.mxu0 %v844
    %905 = vmatprep.subr.bf16.mxu0 0
    %906 = vmatpush1.bf16.msra.mxu0 %v845
    %907 = vmatprep.subr.bf16.mxu0 0
    %908 = vmatpush1.bf16.msra.mxu0 0
    %909 = vmatprep.subr.bf16.mxu0 0
    %910 = vmatpush1.bf16.msra.mxu0 0
    %911 = vmatprep.subr.bf16.mxu0 0
    %912 = vmatpush1.bf16.msra.mxu0 0
    %913 = vmatprep.subr.bf16.mxu0 0
    %914 = vmatpush1.bf16.msra.mxu0 0
    %915 = vmatprep.subr.bf16.mxu0 0
    %916 = vmatpush1.bf16.msra.mxu0 0
    %917 = vmatprep.subr.bf16.mxu0 0
    %918 = vmatpush1.bf16.msra.mxu0 0
    %919 = vmatprep.subr.bf16.mxu0 0
    %920 = vmatpush1.bf16.msra.mxu0 0
    %921 = vmatprep.subr.bf16.mxu0 0
    %922 = vmatpush1.bf16.msra.mxu0 0
    %923 = vmatprep.subr.bf16.mxu0 0
    %924 = vmatpush1.bf16.msra.mxu0 0
    %925 = vmatprep.subr.bf16.mxu0 0
    %926 = vmatpush1.bf16.msra.mxu0 0
    %927 = vmatprep.subr.bf16.mxu0 0
    %928 = vmatpush1.bf16.msra.mxu0 0
    %929 = vmatprep.subr.bf16.mxu0 0
    %930 = vmatpush1.bf16.msra.mxu0 0
    %931 = vmatprep.mubr.bf16.mxu0 0
    %932 = vmatmul.mubr.bf16.gmra.mrb[0].mxu0 %v852
    %v933 = vpop.f32.mrb[0].mxu0
    %v934 = vadd.f32 %v824, %v933
    %v935 = vpop.f32.mrb[0].mxu0
    %v936 = vpop.f32.mrb[0].mxu0
    %v937 = vadd.f32 %v824, %v936
    %v938 = vpop.f32.mrb[0].mxu0
    %939 = vmatprep.mubr.bf16.mxu0 0
    %940 = vmatmul.mubr.bf16.gmra.mrb[0].mxu0 %v855
    %v941 = vpop.f32.mrb[0].mxu0
    %v942 = vadd.f32 %v824, %v941
    %v943 = vpop.f32.mrb[0].mxu0
    %v944 = vpop.f32.mrb[0].mxu0
    %v945 = vadd.f32 %v824, %v944
    %v946 = vpop.f32.mrb[0].mxu0
    %947 = vmatprep.mubr.bf16.mxu0 0
    %948 = vmatmul.mubr.bf16.gmra.mrb[0].mxu0 %v858
    %v949 = vpop.f32.mrb[0].mxu0
    %v950 = vadd.f32 %v824, %v949
    %v951 = vpop.f32.mrb[0].mxu0
    %v952 = vpop.f32.mrb[0].mxu0
    %v953 = vadd.f32 %v824, %v952
    %v954 = vpop.f32.mrb[0].mxu0
    %955 = vmatprep.mubr.bf16.mxu0 0
    %956 = vmatmul.mubr.bf16.gmra.mrb[0].mxu0 %v861
    %v957 = vpop.f32.mrb[0].mxu0
    %v958 = vadd.f32 %v824, %v957
    %v959 = vpop.f32.mrb[0].mxu0
    %v960 = vpop.f32.mrb[0].mxu0
    %v961 = vadd.f32 %v824, %v960
    %v962 = vpop.f32.mrb[0].mxu0
    %963 = vmatprep.mubr.bf16.mxu0 0
    %964 = vmatmul.mubr.bf16.gmra.mrb[0].mxu0 %v864
    %v965 = vpop.f32.mrb[0].mxu0
    %v966 = vadd.f32 %v824, %v965
    %v967 = vpop.f32.mrb[0].mxu0
    %v968 = vpop.f32.mrb[0].mxu0
    %v969 = vadd.f32 %v824, %v968
    %v970 = vpop.f32.mrb[0].mxu0
    %971 = vmatprep.mubr.bf16.mxu0 0
    %972 = vmatmul.mubr.bf16.gmra.mrb[0].mxu0 %v867
    %v973 = vpop.f32.mrb[0].mxu0
    %v974 = vadd.f32 %v824, %v973
    %v975 = vpop.f32.mrb[0].mxu0
    %v976 = vpop.f32.mrb[0].mxu0
    %v977 = vadd.f32 %v824, %v976
    %v978 = vpop.f32.mrb[0].mxu0
    %979 = vmatprep.mubr.bf16.mxu0 0
    %980 = vmatmul.mubr.bf16.gmra.mrb[0].mxu0 %v870
    %v981 = vpop.f32.mrb[0].mxu0
    %v982 = vadd.f32 %v824, %v981
    %v983 = vpop.f32.mrb[0].mxu0
    %v984 = vpop.f32.mrb[0].mxu0
    %v985 = vadd.f32 %v824, %v984
    %v986 = vpop.f32.mrb[0].mxu0
    %987 = vmatprep.mubr.bf16.mxu0 0
    %988 = vmatmul.mubr.bf16.gmra.mrb[0].mxu0 %v873
    %v989 = vpop.f32.mrb[0].mxu0
    %v990 = vadd.f32 %v824, %v989
    %v991 = vpop.f32.mrb[0].mxu0
    %v992 = vpop.f32.mrb[0].mxu0
    %v993 = vadd.f32 %v824, %v992
    %v994 = vpop.f32.mrb[0].mxu0
    %995 = vmatprep.mubr.bf16.mxu0 0
    %996 = vmatmul.mubr.bf16.gmra.mrb[0].mxu0 %v876
    %v997 = vpop.f32.mrb[0].mxu0
    %v998 = vadd.f32 %v824, %v997
    %v999 = vpop.f32.mrb[0].mxu0
    %v1000 = vpop.f32.mrb[0].mxu0
    %v1001 = vadd.f32 %v824, %v1000
    %v1002 = vpop.f32.mrb[0].mxu0
    %1003 = vmatprep.mubr.bf16.mxu0 0
    %1004 = vmatmul.mubr.bf16.gmra.mrb[0].mxu0 %v879
    %v1005 = vpop.f32.mrb[0].mxu0
    %v1006 = vadd.f32 %v824, %v1005
    %v1007 = vpop.f32.mrb[0].mxu0
    %v1008 = vpop.f32.mrb[0].mxu0
    %v1009 = vadd.f32 %v824, %v1008
    %v1010 = vpop.f32.mrb[0].mxu0
    %1011 = vmatprep.mubr.bf16.mxu0 0
    %1012 = vmatmul.mubr.bf16.gmra.mrb[0].mxu0 %v882
    %v1013 = vpop.f32.mrb[0].mxu0
    %v1014 = vadd.f32 %v824, %v1013
    %v1015 = vpop.f32.mrb[0].mxu0
    %v1016 = vpop.f32.mrb[0].mxu0
    %v1017 = vadd.f32 %v824, %v1016
    %v1018 = vpop.f32.mrb[0].mxu0
    %1019 = vmatprep.mubr.bf16.mxu0 0
    %1020 = vmatmul.mubr.bf16.gmra.mrb[0].mxu0 %v885
    %v1021 = vpop.f32.mrb[0].mxu0
    %v1022 = vadd.f32 %v824, %v1021
    %v1023 = vpop.f32.mrb[0].mxu0
    %v1024 = vpop.f32.mrb[0].mxu0
    %v1025 = vadd.f32 %v824, %v1024
    %v1026 = vpop.f32.mrb[0].mxu0
    %1027 = vmatprep.mubr.bf16.mxu0 0
    %1028 = vmatmul.mubr.bf16.gmra.mrb[0].mxu0 %v888
    %v1029 = vpop.f32.mrb[0].mxu0
    %v1030 = vadd.f32 %v824, %v1029
    %v1031 = vpop.f32.mrb[0].mxu0
    %v1032 = vpop.f32.mrb[0].mxu0
    %v1033 = vadd.f32 %v824, %v1032
    %v1034 = vpop.f32.mrb[0].mxu0
    %1035 = vmatprep.mubr.bf16.mxu0 0
    %1036 = vmatmul.mubr.bf16.gmra.mrb[0].mxu0 %v891
    %v1037 = vpop.f32.mrb[0].mxu0
    %v1038 = vadd.f32 %v824, %v1037
    %v1039 = vpop.f32.mrb[0].mxu0
    %v1040 = vpop.f32.mrb[0].mxu0
    %v1041 = vadd.f32 %v824, %v1040
    %v1042 = vpop.f32.mrb[0].mxu0
    %1043 = vmatprep.mubr.bf16.mxu0 0
    %1044 = vmatmul.mubr.bf16.gmra.mrb[0].mxu0 %v894
    %v1045 = vpop.f32.mrb[0].mxu0
    %v1046 = vadd.f32 %v824, %v1045
    %v1047 = vpop.f32.mrb[0].mxu0
    %v1048 = vpop.f32.mrb[0].mxu0
    %v1049 = vadd.f32 %v824, %v1048
    %v1050 = vpop.f32.mrb[0].mxu0
    %1051 = vmatprep.mubr.bf16.mxu0 0
    %1052 = vmatmul.mubr.bf16.gmra.mrb[0].mxu0 %v897
    %v1053 = vpop.f32.mrb[0].mxu0
    %v1054 = vadd.f32 %v824, %v1053
    %v1055 = vpop.f32.mrb[0].mxu0
    %v1056 = vpop.f32.mrb[0].mxu0
    %v1057 = vadd.f32 %v824, %v1056
    %v1058 = vpop.f32.mrb[0].mxu0
    %1059 = vdwg.mxu0
    %v1060 = vld [vmem:[%s9] sm:$0xf]
    %v1061 = vld [vmem:[%s9 + $0x4] sm:$0xf]
    %v1062 = vld [vmem:[%s9 + $0x8] sm:$0xf]
    %v1063 = vld [vmem:[%s9 + $0xc] sm:$0xf]
    %v1064 = vld [vmem:[%s10] sm:$0x1]
    %v1065 = vld [vmem:[%s2] sm:$0xf]
    %v1066 = vld [vmem:[%s2 + $0x4] sm:$0xf]
    %v1067 = vld [vmem:[%s2 + $0x8] sm:$0xf]
    %v1068 = vld [vmem:[%s2 + $0xc] sm:$0xf]
    %v1069 = vld [vmem:[%s2 + $0x10] sm:$0xf]
    %v1070 = vld [vmem:[%s2 + $0x14] sm:$0xf]
    %v1071 = vld [vmem:[%s2 + $0x18] sm:$0xf]
    %v1072 = vld [vmem:[%s2 + $0x1c] sm:$0xf]
    %v1073 = vld [vmem:[%s2 + $0x20] sm:$0xf]
    %v1074 = vld [vmem:[%s2 + $0x24] sm:$0xf]
    %v1075 = vld [vmem:[%s2 + $0x28] sm:$0xf]
    %v1076 = vld [vmem:[%s2 + $0x2c] sm:$0xf]
    %v1077 = vld [vmem:[%s2 + $0x30] sm:$0xf]
    %v1078 = vld [vmem:[%s2 + $0x34] sm:$0xf]
    %v1079 = vld [vmem:[%s2 + $0x38] sm:$0xf]
    %v1080 = vld [vmem:[%s2 + $0x3c] sm:$0xf]
    %v1081 = vld [vmem:[%s2 + $0x40] sm:$0xf]
    %v1082 = vld [vmem:[%s2 + $0x44] sm:$0xf]
    %v1083 = vld [vmem:[%s2 + $0x48] sm:$0xf]
    %v1084 = vld [vmem:[%s2 + $0x4c] sm:$0xf]
    %v1085 = vld [vmem:[%s2 + $0x50] sm:$0xf]
    %v1086 = vld [vmem:[%s2 + $0x54] sm:$0xf]
    %v1087 = vld [vmem:[%s2 + $0x58] sm:$0xf]
    %v1088 = vld [vmem:[%s2 + $0x5c] sm:$0xf]
    %v1089 = vld [vmem:[%s2 + $0x60] sm:$0xf]
    %v1090 = vld [vmem:[%s2 + $0x64] sm:$0xf]
    %v1091 = vld [vmem:[%s2 + $0x68] sm:$0xf]
    %v1092 = vld [vmem:[%s2 + $0x6c] sm:$0xf]
    %v1093 = vld [vmem:[%s2 + $0x70] sm:$0xf]
    %v1094 = vld [vmem:[%s2 + $0x74] sm:$0xf]
    %v1095 = vld [vmem:[%s2 + $0x78] sm:$0xf]
    %v1096 = vld [vmem:[%s2 + $0x7c] sm:$0xf]
    %v1097 = vld [vmem:[%s3] sm:$0xf]
    %v1098 = vld [vmem:[%s3 + $0x4] sm:$0xf]
    %v1099 = vld [vmem:[%s3 + $0x8] sm:$0xf]
    %v1100 = vld [vmem:[%s3 + $0xc] sm:$0xf]
    %v1101 = vld [vmem:[%s3 + $0x10] sm:$0xf]
    %v1102 = vld [vmem:[%s3 + $0x14] sm:$0xf]
    %v1103 = vld [vmem:[%s3 + $0x18] sm:$0xf]
    %v1104 = vld [vmem:[%s3 + $0x1c] sm:$0xf]
    %v1105 = vld [vmem:[%s3 + $0x20] sm:$0xf]
    %v1106 = vld [vmem:[%s3 + $0x24] sm:$0xf]
    %v1107 = vld [vmem:[%s3 + $0x28] sm:$0xf]
    %v1108 = vld [vmem:[%s3 + $0x2c] sm:$0xf]
    %v1109 = vld [vmem:[%s3 + $0x30] sm:$0xf]
    %v1110 = vld [vmem:[%s3 + $0x34] sm:$0xf]
    %v1111 = vld [vmem:[%s3 + $0x38] sm:$0xf]
    %v1112 = vld [vmem:[%s3 + $0x3c] sm:$0xf]
    %v1113 = vld [vmem:[%s3 + $0x40] sm:$0xf]
    %v1114 = vld [vmem:[%s3 + $0x44] sm:$0xf]
    %v1115 = vld [vmem:[%s3 + $0x48] sm:$0xf]
    %v1116 = vld [vmem:[%s3 + $0x4c] sm:$0xf]
    %v1117 = vld [vmem:[%s3 + $0x50] sm:$0xf]
    %v1118 = vld [vmem:[%s3 + $0x54] sm:$0xf]
    %v1119 = vld [vmem:[%s3 + $0x58] sm:$0xf]
    %v1120 = vld [vmem:[%s3 + $0x5c] sm:$0xf]
    %v1121 = vld [vmem:[%s3 + $0x60] sm:$0xf]
    %v1122 = vld [vmem:[%s3 + $0x64] sm:$0xf]
    %v1123 = vld [vmem:[%s3 + $0x68] sm:$0xf]
    %v1124 = vld [vmem:[%s3 + $0x6c] sm:$0xf]
    %v1125 = vld [vmem:[%s3 + $0x70] sm:$0xf]
    %v1126 = vld [vmem:[%s3 + $0x74] sm:$0xf]
    %v1127 = vld [vmem:[%s3 + $0x78] sm:$0xf]
    %v1128 = vld [vmem:[%s3 + $0x7c] sm:$0xf]
    %v1129 = vmul.bf16 %v1065, %v1097
    %v1130 = vmul.bf16 %v1066, %v1098
    %v1131 = vmul.bf16 %v1067, %v1099
    %v1132 = vmul.bf16 %v1068, %v1100
    %v1133 = vmul.bf16 %v1069, %v1101
    %v1134 = vmul.bf16 %v1070, %v1102
    %v1135 = vmul.bf16 %v1071, %v1103
    %v1136 = vmul.bf16 %v1072, %v1104
    %v1137 = vmul.bf16 %v1073, %v1105
    %v1138 = vmul.bf16 %v1074, %v1106
    %v1139 = vmul.bf16 %v1075, %v1107
    %v1140 = vmul.bf16 %v1076, %v1108
    %v1141 = vmul.bf16 %v1077, %v1109
    %v1142 = vmul.bf16 %v1078, %v1110
    %v1143 = vmul.bf16 %v1079, %v1111
    %v1144 = vmul.bf16 %v1080, %v1112
    %v1145 = vmul.bf16 %v1081, %v1113
    %v1146 = vmul.bf16 %v1082, %v1114
    %v1147 = vmul.bf16 %v1083, %v1115
    %v1148 = vmul.bf16 %v1084, %v1116
    %v1149 = vmul.bf16 %v1085, %v1117
    %v1150 = vmul.bf16 %v1086, %v1118
    %v1151 = vmul.bf16 %v1087, %v1119
    %v1152 = vmul.bf16 %v1088, %v1120
    %v1153 = vmul.bf16 %v1089, %v1121
    %v1154 = vmul.bf16 %v1090, %v1122
    %v1155 = vmul.bf16 %v1091, %v1123
    %v1156 = vmul.bf16 %v1092, %v1124
    %v1157 = vmul.bf16 %v1093, %v1125
    %v1158 = vmul.bf16 %v1094, %v1126
    %v1159 = vmul.bf16 %v1095, %v1127
    %v1160 = vmul.bf16 %v1096, %v1128
    %v1162 = vlaneseq
    %v1163 = vshrl.u32 %v1162, 7
    %v1164 = vsub.s32 0, %v1163
    %v1165 = vrot.slane %v1064, %v1164
    %v1199 = vunpack.c.l.b16 %v1129
    %v1200 = vunpack.c.l.b16 %v1130
    %v1201 = vunpack.c.l.b16 %v1131
    %v1202 = vunpack.c.l.b16 %v1132
    %v1203 = vunpack.c.l.b16 %v1133
    %v1204 = vunpack.c.l.b16 %v1134
    %v1205 = vunpack.c.l.b16 %v1135
    %v1206 = vunpack.c.l.b16 %v1136
    %v1207 = vunpack.c.l.b16 %v1137
    %v1208 = vunpack.c.l.b16 %v1138
    %v1209 = vunpack.c.l.b16 %v1139
    %v1210 = vunpack.c.l.b16 %v1140
    %v1211 = vunpack.c.l.b16 %v1141
    %v1212 = vunpack.c.l.b16 %v1142
    %v1213 = vunpack.c.l.b16 %v1143
    %v1214 = vunpack.c.l.b16 %v1144
    %v1215 = vunpack.c.l.b16 %v1145
    %v1216 = vunpack.c.l.b16 %v1146
    %v1217 = vunpack.c.l.b16 %v1147
    %v1218 = vunpack.c.l.b16 %v1148
    %v1219 = vunpack.c.l.b16 %v1149
    %v1220 = vunpack.c.l.b16 %v1150
    %v1221 = vunpack.c.l.b16 %v1151
    %v1222 = vunpack.c.l.b16 %v1152
    %v1223 = vunpack.c.l.b16 %v1153
    %v1224 = vunpack.c.l.b16 %v1154
    %v1225 = vunpack.c.l.b16 %v1155
    %v1226 = vunpack.c.l.b16 %v1156
    %v1227 = vunpack.c.l.b16 %v1157
    %v1228 = vunpack.c.l.b16 %v1158
    %v1229 = vunpack.c.l.b16 %v1159
    %v1230 = vunpack.c.l.b16 %v1160
    %v1231 = vpack.c.b16 %v1200, %v1199
    %v1232 = vpack.c.b16 %v1202, %v1201
    %v1233 = vpack.c.b16 %v1204, %v1203
    %v1234 = vpack.c.b16 %v1206, %v1205
    %v1235 = vpack.c.b16 %v1208, %v1207
    %v1236 = vpack.c.b16 %v1210, %v1209
    %v1237 = vpack.c.b16 %v1212, %v1211
    %v1238 = vpack.c.b16 %v1214, %v1213
    %v1239 = vpack.c.b16 %v1216, %v1215
    %v1240 = vpack.c.b16 %v1218, %v1217
    %v1241 = vpack.c.b16 %v1220, %v1219
    %v1242 = vpack.c.b16 %v1222, %v1221
    %v1243 = vpack.c.b16 %v1224, %v1223
    %v1244 = vpack.c.b16 %v1226, %v1225
    %v1245 = vpack.c.b16 %v1228, %v1227
    %v1246 = vpack.c.b16 %v1230, %v1229
    %v1251 = vunpack.c.l.b16 %v1060
    %v1252 = vunpack.c.l.b16 %v1061
    %v1253 = vunpack.c.l.b16 %v1062
    %v1254 = vunpack.c.l.b16 %v1063
    %v1255 = vpack.c.b16 %v1252, %v1251
    %v1256 = vpack.c.b16 %v1254, %v1253
    %v1260 = vsel %vm214, %v1231, 0
    %v1263 = vsel %vm214, %v1232, 0
    %v1266 = vsel %vm214, %v1233, 0
    %v1269 = vsel %vm214, %v1234, 0
    %v1272 = vsel %vm214, %v1235, 0
    %v1275 = vsel %vm214, %v1236, 0
    %v1278 = vsel %vm214, %v1237, 0
    %v1281 = vsel %vm214, %v1238, 0
    %v1284 = vsel %vm214, %v1239, 0
    %v1287 = vsel %vm214, %v1240, 0
    %v1290 = vsel %vm214, %v1241, 0
    %v1293 = vsel %vm214, %v1242, 0
    %v1296 = vsel %vm214, %v1243, 0
    %v1299 = vsel %vm214, %v1244, 0
    %v1302 = vsel %vm214, %v1245, 0
    %v1305 = vsel %vm214, %v1246, 0
    %1307 = vmatprep.subr.bf16.mxu0 0
    %1308 = vmatpush1.bf16.msra.mxu0 %v1255
    %1309 = vmatprep.subr.bf16.mxu0 0
    %1310 = vmatpush1.bf16.msra.mxu0 %v1256
    %1311 = vmatprep.subr.bf16.mxu0 0
    %1312 = vmatpush1.bf16.msra.mxu0 0
    %1313 = vmatprep.subr.bf16.mxu0 0
    %1314 = vmatpush1.bf16.msra.mxu0 0
    %1315 = vmatprep.subr.bf16.mxu0 0
    %1316 = vmatpush1.bf16.msra.mxu0 0
    %1317 = vmatprep.subr.bf16.mxu0 0
    %1318 = vmatpush1.bf16.msra.mxu0 0
    %1319 = vmatprep.subr.bf16.mxu0 0
    %1320 = vmatpush1.bf16.msra.mxu0 0
    %1321 = vmatprep.subr.bf16.mxu0 0
    %1322 = vmatpush1.bf16.msra.mxu0 0
    %1323 = vmatprep.subr.bf16.mxu0 0
    %1324 = vmatpush1.bf16.msra.mxu0 0
    %1325 = vmatprep.subr.bf16.mxu0 0
    %1326 = vmatpush1.bf16.msra.mxu0 0
    %1327 = vmatprep.subr.bf16.mxu0 0
    %1328 = vmatpush1.bf16.msra.mxu0 0
    %1329 = vmatprep.subr.bf16.mxu0 0
    %1330 = vmatpush1.bf16.msra.mxu0 0
    %1331 = vmatprep.subr.bf16.mxu0 0
    %1332 = vmatpush1.bf16.msra.mxu0 0
    %1333 = vmatprep.subr.bf16.mxu0 0
    %1334 = vmatpush1.bf16.msra.mxu0 0
    %1335 = vmatprep.subr.bf16.mxu0 0
    %1336 = vmatpush1.bf16.msra.mxu0 0
    %1337 = vmatprep.subr.bf16.mxu0 0
    %1338 = vmatpush1.bf16.msra.mxu0 0
    %1339 = vmatprep.mubr.bf16.mxu0 0
    %1340 = vmatmul.mubr.bf16.gmra.mrb[0].mxu0 %v1260
    %v1341 = vpop.f32.mrb[0].mxu0
    %v1342 = vadd.f32 %v1165, %v1341
    %v1343 = vpop.f32.mrb[0].mxu0
    %v1344 = vpop.f32.mrb[0].mxu0
    %v1345 = vadd.f32 %v1165, %v1344
    %v1346 = vpop.f32.mrb[0].mxu0
    %1347 = vmatprep.mubr.bf16.mxu0 0
    %1348 = vmatmul.mubr.bf16.gmra.mrb[0].mxu0 %v1263
    %v1349 = vpop.f32.mrb[0].mxu0
    %v1350 = vadd.f32 %v1165, %v1349
    %v1351 = vpop.f32.mrb[0].mxu0
    %v1352 = vpop.f32.mrb[0].mxu0
    %v1353 = vadd.f32 %v1165, %v1352
    %v1354 = vpop.f32.mrb[0].mxu0
    %1355 = vmatprep.mubr.bf16.mxu0 0
    %1356 = vmatmul.mubr.bf16.gmra.mrb[0].mxu0 %v1266
    %v1357 = vpop.f32.mrb[0].mxu0
    %v1358 = vadd.f32 %v1165, %v1357
    %v1359 = vpop.f32.mrb[0].mxu0
    %v1360 = vpop.f32.mrb[0].mxu0
    %v1361 = vadd.f32 %v1165, %v1360
    %v1362 = vpop.f32.mrb[0].mxu0
    %1363 = vmatprep.mubr.bf16.mxu0 0
    %1364 = vmatmul.mubr.bf16.gmra.mrb[0].mxu0 %v1269
    %v1365 = vpop.f32.mrb[0].mxu0
    %v1366 = vadd.f32 %v1165, %v1365
    %v1367 = vpop.f32.mrb[0].mxu0
    %v1368 = vpop.f32.mrb[0].mxu0
    %v1369 = vadd.f32 %v1165, %v1368
    %v1370 = vpop.f32.mrb[0].mxu0
    %1371 = vmatprep.mubr.bf16.mxu0 0
    %1372 = vmatmul.mubr.bf16.gmra.mrb[0].mxu0 %v1272
    %v1373 = vpop.f32.mrb[0].mxu0
    %v1374 = vadd.f32 %v1165, %v1373
    %v1375 = vpop.f32.mrb[0].mxu0
    %v1376 = vpop.f32.mrb[0].mxu0
    %v1377 = vadd.f32 %v1165, %v1376
    %v1378 = vpop.f32.mrb[0].mxu0
    %1379 = vmatprep.mubr.bf16.mxu0 0
    %1380 = vmatmul.mubr.bf16.gmra.mrb[0].mxu0 %v1275
    %v1381 = vpop.f32.mrb[0].mxu0
    %v1382 = vadd.f32 %v1165, %v1381
    %v1383 = vpop.f32.mrb[0].mxu0
    %v1384 = vpop.f32.mrb[0].mxu0
    %v1385 = vadd.f32 %v1165, %v1384
    %v1386 = vpop.f32.mrb[0].mxu0
    %1387 = vmatprep.mubr.bf16.mxu0 0
    %1388 = vmatmul.mubr.bf16.gmra.mrb[0].mxu0 %v1278
    %v1389 = vpop.f32.mrb[0].mxu0
    %v1390 = vadd.f32 %v1165, %v1389
    %v1391 = vpop.f32.mrb[0].mxu0
    %v1392 = vpop.f32.mrb[0].mxu0
    %v1393 = vadd.f32 %v1165, %v1392
    %v1394 = vpop.f32.mrb[0].mxu0
    %1395 = vmatprep.mubr.bf16.mxu0 0
    %1396 = vmatmul.mubr.bf16.gmra.mrb[0].mxu0 %v1281
    %v1397 = vpop.f32.mrb[0].mxu0
    %v1398 = vadd.f32 %v1165, %v1397
    %v1399 = vpop.f32.mrb[0].mxu0
    %v1400 = vpop.f32.mrb[0].mxu0
    %v1401 = vadd.f32 %v1165, %v1400
    %v1402 = vpop.f32.mrb[0].mxu0
    %1403 = vmatprep.mubr.bf16.mxu0 0
    %1404 = vmatmul.mubr.bf16.gmra.mrb[0].mxu0 %v1284
    %v1405 = vpop.f32.mrb[0].mxu0
    %v1406 = vadd.f32 %v1165, %v1405
    %v1407 = vpop.f32.mrb[0].mxu0
    %v1408 = vpop.f32.mrb[0].mxu0
    %v1409 = vadd.f32 %v1165, %v1408
    %v1410 = vpop.f32.mrb[0].mxu0
    %1411 = vmatprep.mubr.bf16.mxu0 0
    %1412 = vmatmul.mubr.bf16.gmra.mrb[0].mxu0 %v1287
    %v1413 = vpop.f32.mrb[0].mxu0
    %v1414 = vadd.f32 %v1165, %v1413
    %v1415 = vpop.f32.mrb[0].mxu0
    %v1416 = vpop.f32.mrb[0].mxu0
    %v1417 = vadd.f32 %v1165, %v1416
    %v1418 = vpop.f32.mrb[0].mxu0
    %1419 = vmatprep.mubr.bf16.mxu0 0
    %1420 = vmatmul.mubr.bf16.gmra.mrb[0].mxu0 %v1290
    %v1421 = vpop.f32.mrb[0].mxu0
    %v1422 = vadd.f32 %v1165, %v1421
    %v1423 = vpop.f32.mrb[0].mxu0
    %v1424 = vpop.f32.mrb[0].mxu0
    %v1425 = vadd.f32 %v1165, %v1424
    %v1426 = vpop.f32.mrb[0].mxu0
    %1427 = vmatprep.mubr.bf16.mxu0 0
    %1428 = vmatmul.mubr.bf16.gmra.mrb[0].mxu0 %v1293
    %v1429 = vpop.f32.mrb[0].mxu0
    %v1430 = vadd.f32 %v1165, %v1429
    %v1431 = vpop.f32.mrb[0].mxu0
    %v1432 = vpop.f32.mrb[0].mxu0
    %v1433 = vadd.f32 %v1165, %v1432
    %v1434 = vpop.f32.mrb[0].mxu0
    %1435 = vmatprep.mubr.bf16.mxu0 0
    %1436 = vmatmul.mubr.bf16.gmra.mrb[0].mxu0 %v1296
    %v1437 = vpop.f32.mrb[0].mxu0
    %v1438 = vadd.f32 %v1165, %v1437
    %v1439 = vpop.f32.mrb[0].mxu0
    %v1440 = vpop.f32.mrb[0].mxu0
    %v1441 = vadd.f32 %v1165, %v1440
    %v1442 = vpop.f32.mrb[0].mxu0
    %1443 = vmatprep.mubr.bf16.mxu0 0
    %1444 = vmatmul.mubr.bf16.gmra.mrb[0].mxu0 %v1299
    %v1445 = vpop.f32.mrb[0].mxu0
    %v1446 = vadd.f32 %v1165, %v1445
    %v1447 = vpop.f32.mrb[0].mxu0
    %v1448 = vpop.f32.mrb[0].mxu0
    %v1449 = vadd.f32 %v1165, %v1448
    %v1450 = vpop.f32.mrb[0].mxu0
    %1451 = vmatprep.mubr.bf16.mxu0 0
    %1452 = vmatmul.mubr.bf16.gmra.mrb[0].mxu0 %v1302
    %v1453 = vpop.f32.mrb[0].mxu0
    %v1454 = vadd.f32 %v1165, %v1453
    %v1455 = vpop.f32.mrb[0].mxu0
    %v1456 = vpop.f32.mrb[0].mxu0
    %v1457 = vadd.f32 %v1165, %v1456
    %v1458 = vpop.f32.mrb[0].mxu0
    %1459 = vmatprep.mubr.bf16.mxu0 0
    %1460 = vmatmul.mubr.bf16.gmra.mrb[0].mxu0 %v1305
    %v1461 = vpop.f32.mrb[0].mxu0
    %v1462 = vadd.f32 %v1165, %v1461
    %v1463 = vpop.f32.mrb[0].mxu0
    %v1464 = vpop.f32.mrb[0].mxu0
    %v1465 = vadd.f32 %v1165, %v1464
    %v1466 = vpop.f32.mrb[0].mxu0
    %1467 = vdwg.mxu0
    %v1468 = vxor.u32 %v1342, 2147483648
    %v1469 = vxor.u32 %v1345, 2147483648
    %v1470 = vxor.u32 %v1350, 2147483648
    %v1471 = vxor.u32 %v1353, 2147483648
    %v1472 = vxor.u32 %v1358, 2147483648
    %v1473 = vxor.u32 %v1361, 2147483648
    %v1474 = vxor.u32 %v1366, 2147483648
    %v1475 = vxor.u32 %v1369, 2147483648
    %v1476 = vxor.u32 %v1374, 2147483648
    %v1477 = vxor.u32 %v1377, 2147483648
    %v1478 = vxor.u32 %v1382, 2147483648
    %v1479 = vxor.u32 %v1385, 2147483648
    %v1480 = vxor.u32 %v1390, 2147483648
    %v1481 = vxor.u32 %v1393, 2147483648
    %v1482 = vxor.u32 %v1398, 2147483648
    %v1483 = vxor.u32 %v1401, 2147483648
    %v1484 = vxor.u32 %v1406, 2147483648
    %v1485 = vxor.u32 %v1409, 2147483648
    %v1486 = vxor.u32 %v1414, 2147483648
    %v1487 = vxor.u32 %v1417, 2147483648
    %v1488 = vxor.u32 %v1422, 2147483648
    %v1489 = vxor.u32 %v1425, 2147483648
    %v1490 = vxor.u32 %v1430, 2147483648
    %v1491 = vxor.u32 %v1433, 2147483648
    %v1492 = vxor.u32 %v1438, 2147483648
    %v1493 = vxor.u32 %v1441, 2147483648
    %v1494 = vxor.u32 %v1446, 2147483648
    %v1495 = vxor.u32 %v1449, 2147483648
    %v1496 = vxor.u32 %v1454, 2147483648
    %v1497 = vxor.u32 %v1457, 2147483648
    %v1498 = vxor.u32 %v1462, 2147483648
    %v1499 = vxor.u32 %v1465, 2147483648
    %v1500 = vmul.f32 %v1468, 1.442695
    %v1501 = vpow.pop %v1500
    %v1502 = vmul.f32 %v1469, 1.442695
    %v1503 = vpow.pop %v1502
    %v1504 = vmul.f32 %v1470, 1.442695
    %v1505 = vpow.pop %v1504
    %v1506 = vmul.f32 %v1471, 1.442695
    %v1507 = vpow.pop %v1506
    %v1508 = vmul.f32 %v1472, 1.442695
    %v1509 = vpow.pop %v1508
    %v1510 = vmul.f32 %v1473, 1.442695
    %v1511 = vpow.pop %v1510
    %v1512 = vmul.f32 %v1474, 1.442695
    %v1513 = vpow.pop %v1512
    %v1514 = vmul.f32 %v1475, 1.442695
    %v1515 = vpow.pop %v1514
    %v1516 = vmul.f32 %v1476, 1.442695
    %v1517 = vpow.pop %v1516
    %v1518 = vmul.f32 %v1477, 1.442695
    %v1519 = vpow.pop %v1518
    %v1520 = vmul.f32 %v1478, 1.442695
    %v1521 = vpow.pop %v1520
    %v1522 = vmul.f32 %v1479, 1.442695
    %v1523 = vpow.pop %v1522
    %v1524 = vmul.f32 %v1480, 1.442695
    %v1525 = vpow.pop %v1524
    %v1526 = vmul.f32 %v1481, 1.442695
    %v1527 = vpow.pop %v1526
    %v1528 = vmul.f32 %v1482, 1.442695
    %v1529 = vpow.pop %v1528
    %v1530 = vmul.f32 %v1483, 1.442695
    %v1531 = vpow.pop %v1530
    %v1532 = vmul.f32 %v1484, 1.442695
    %v1533 = vpow.pop %v1532
    %v1534 = vmul.f32 %v1485, 1.442695
    %v1535 = vpow.pop %v1534
    %v1536 = vmul.f32 %v1486, 1.442695
    %v1537 = vpow.pop %v1536
    %v1538 = vmul.f32 %v1487, 1.442695
    %v1539 = vpow.pop %v1538
    %v1540 = vmul.f32 %v1488, 1.442695
    %v1541 = vpow.pop %v1540
    %v1542 = vmul.f32 %v1489, 1.442695
    %v1543 = vpow.pop %v1542
    %v1544 = vmul.f32 %v1490, 1.442695
    %v1545 = vpow.pop %v1544
    %v1546 = vmul.f32 %v1491, 1.442695
    %v1547 = vpow.pop %v1546
    %v1548 = vmul.f32 %v1492, 1.442695
    %v1549 = vpow.pop %v1548
    %v1550 = vmul.f32 %v1493, 1.442695
    %v1551 = vpow.pop %v1550
    %v1552 = vmul.f32 %v1494, 1.442695
    %v1553 = vpow.pop %v1552
    %v1554 = vmul.f32 %v1495, 1.442695
    %v1555 = vpow.pop %v1554
    %v1556 = vmul.f32 %v1496, 1.442695
    %v1557 = vpow.pop %v1556
    %v1558 = vmul.f32 %v1497, 1.442695
    %v1559 = vpow.pop %v1558
    %v1560 = vmul.f32 %v1498, 1.442695
    %v1561 = vpow.pop %v1560
    %v1562 = vmul.f32 %v1499, 1.442695
    %v1563 = vpow.pop %v1562
    %v1564 = vadd.f32 %v1501, 1.0
    %v1565 = vadd.f32 %v1503, 1.0
    %v1566 = vadd.f32 %v1505, 1.0
    %v1567 = vadd.f32 %v1507, 1.0
    %v1568 = vadd.f32 %v1509, 1.0
    %v1569 = vadd.f32 %v1511, 1.0
    %v1570 = vadd.f32 %v1513, 1.0
    %v1571 = vadd.f32 %v1515, 1.0
    %v1572 = vadd.f32 %v1517, 1.0
    %v1573 = vadd.f32 %v1519, 1.0
    %v1574 = vadd.f32 %v1521, 1.0
    %v1575 = vadd.f32 %v1523, 1.0
    %v1576 = vadd.f32 %v1525, 1.0
    %v1577 = vadd.f32 %v1527, 1.0
    %v1578 = vadd.f32 %v1529, 1.0
    %v1579 = vadd.f32 %v1531, 1.0
    %v1580 = vadd.f32 %v1533, 1.0
    %v1581 = vadd.f32 %v1535, 1.0
    %v1582 = vadd.f32 %v1537, 1.0
    %v1583 = vadd.f32 %v1539, 1.0
    %v1584 = vadd.f32 %v1541, 1.0
    %v1585 = vadd.f32 %v1543, 1.0
    %v1586 = vadd.f32 %v1545, 1.0
    %v1587 = vadd.f32 %v1547, 1.0
    %v1588 = vadd.f32 %v1549, 1.0
    %v1589 = vadd.f32 %v1551, 1.0
    %v1590 = vadd.f32 %v1553, 1.0
    %v1591 = vadd.f32 %v1555, 1.0
    %v1592 = vadd.f32 %v1557, 1.0
    %v1593 = vadd.f32 %v1559, 1.0
    %v1594 = vadd.f32 %v1561, 1.0
    %v1595 = vadd.f32 %v1563, 1.0
    %v1596 = vrcp.pop %v1564
    %v1597 = vmul.f32 1.0, %v1596
    %v1598 = vrcp.pop %v1565
    %v1599 = vmul.f32 1.0, %v1598
    %v1600 = vrcp.pop %v1566
    %v1601 = vmul.f32 1.0, %v1600
    %v1602 = vrcp.pop %v1567
    %v1603 = vmul.f32 1.0, %v1602
    %v1604 = vrcp.pop %v1568
    %v1605 = vmul.f32 1.0, %v1604
    %v1606 = vrcp.pop %v1569
    %v1607 = vmul.f32 1.0, %v1606
    %v1608 = vrcp.pop %v1570
    %v1609 = vmul.f32 1.0, %v1608
    %v1610 = vrcp.pop %v1571
    %v1611 = vmul.f32 1.0, %v1610
    %v1612 = vrcp.pop %v1572
    %v1613 = vmul.f32 1.0, %v1612
    %v1614 = vrcp.pop %v1573
    %v1615 = vmul.f32 1.0, %v1614
    %v1616 = vrcp.pop %v1574
    %v1617 = vmul.f32 1.0, %v1616
    %v1618 = vrcp.pop %v1575
    %v1619 = vmul.f32 1.0, %v1618
    %v1620 = vrcp.pop %v1576
    %v1621 = vmul.f32 1.0, %v1620
    %v1622 = vrcp.pop %v1577
    %v1623 = vmul.f32 1.0, %v1622
    %v1624 = vrcp.pop %v1578
    %v1625 = vmul.f32 1.0, %v1624
    %v1626 = vrcp.pop %v1579
    %v1627 = vmul.f32 1.0, %v1626
    %v1628 = vrcp.pop %v1580
    %v1629 = vmul.f32 1.0, %v1628
    %v1630 = vrcp.pop %v1581
    %v1631 = vmul.f32 1.0, %v1630
    %v1632 = vrcp.pop %v1582
    %v1633 = vmul.f32 1.0, %v1632
    %v1634 = vrcp.pop %v1583
    %v1635 = vmul.f32 1.0, %v1634
    %v1636 = vrcp.pop %v1584
    %v1637 = vmul.f32 1.0, %v1636
    %v1638 = vrcp.pop %v1585
    %v1639 = vmul.f32 1.0, %v1638
    %v1640 = vrcp.pop %v1586
    %v1641 = vmul.f32 1.0, %v1640
    %v1642 = vrcp.pop %v1587
    %v1643 = vmul.f32 1.0, %v1642
    %v1644 = vrcp.pop %v1588
    %v1645 = vmul.f32 1.0, %v1644
    %v1646 = vrcp.pop %v1589
    %v1647 = vmul.f32 1.0, %v1646
    %v1648 = vrcp.pop %v1590
    %v1649 = vmul.f32 1.0, %v1648
    %v1650 = vrcp.pop %v1591
    %v1651 = vmul.f32 1.0, %v1650
    %v1652 = vrcp.pop %v1592
    %v1653 = vmul.f32 1.0, %v1652
    %v1654 = vrcp.pop %v1593
    %v1655 = vmul.f32 1.0, %v1654
    %v1656 = vrcp.pop %v1594
    %v1657 = vmul.f32 1.0, %v1656
    %v1658 = vrcp.pop %v1595
    %v1659 = vmul.f32 1.0, %v1658
    %v1660 = vld [vmem:[%s11] sm:$0xf]
    %v1661 = vld [vmem:[%s11 + $0x4] sm:$0xf]
    %v1662 = vld [vmem:[%s11 + $0x8] sm:$0xf]
    %v1663 = vld [vmem:[%s11 + $0xc] sm:$0xf]
    %v1664 = vld [vmem:[%s12] sm:$0xf]
    %v1665 = vld [vmem:[%s12 + $0x4] sm:$0xf]
    %v1666 = vld [vmem:[%s12 + $0x8] sm:$0xf]
    %v1667 = vld [vmem:[%s12 + $0xc] sm:$0xf]
    %v1668 = vld [vmem:[%s13] sm:$0x1]
    %v1669 = vpack.c.bf16 %v937, %v934
    %v1670 = vpack.c.bf16 %v945, %v942
    %v1671 = vpack.c.bf16 %v953, %v950
    %v1672 = vpack.c.bf16 %v961, %v958
    %v1673 = vpack.c.bf16 %v969, %v966
    %v1674 = vpack.c.bf16 %v977, %v974
    %v1675 = vpack.c.bf16 %v985, %v982
    %v1676 = vpack.c.bf16 %v993, %v990
    %v1677 = vpack.c.bf16 %v1001, %v998
    %v1678 = vpack.c.bf16 %v1009, %v1006
    %v1679 = vpack.c.bf16 %v1017, %v1014
    %v1680 = vpack.c.bf16 %v1025, %v1022
    %v1681 = vpack.c.bf16 %v1033, %v1030
    %v1682 = vpack.c.bf16 %v1041, %v1038
    %v1683 = vpack.c.bf16 %v1049, %v1046
    %v1684 = vpack.c.bf16 %v1057, %v1054
    %v1685 = vpack.c.bf16 %v1599, %v1597
    %v1686 = vpack.c.bf16 %v1603, %v1601
    %v1687 = vpack.c.bf16 %v1607, %v1605
    %v1688 = vpack.c.bf16 %v1611, %v1609
    %v1689 = vpack.c.bf16 %v1615, %v1613
    %v1690 = vpack.c.bf16 %v1619, %v1617
    %v1691 = vpack.c.bf16 %v1623, %v1621
    %v1692 = vpack.c.bf16 %v1627, %v1625
    %v1693 = vpack.c.bf16 %v1631, %v1629
    %v1694 = vpack.c.bf16 %v1635, %v1633
    %v1695 = vpack.c.bf16 %v1639, %v1637
    %v1696 = vpack.c.bf16 %v1643, %v1641
    %v1697 = vpack.c.bf16 %v1647, %v1645
    %v1698 = vpack.c.bf16 %v1651, %v1649
    %v1699 = vpack.c.bf16 %v1655, %v1653
    %v1700 = vpack.c.bf16 %v1659, %v1657
    %v1705 = vunpack.c.l.b16 %v1664
    %v1706 = vunpack.c.l.b16 %v1665
    %v1707 = vunpack.c.l.b16 %v1666
    %v1708 = vunpack.c.l.b16 %v1667
    %v1709 = vpack.c.b16 %v1706, %v1705
    %v1710 = vpack.c.b16 %v1708, %v1707
    %v1714 = vsel %vm214, %v1685, 0
    %v1717 = vsel %vm214, %v1686, 0
    %v1720 = vsel %vm214, %v1687, 0
    %v1723 = vsel %vm214, %v1688, 0
    %v1726 = vsel %vm214, %v1689, 0
    %v1729 = vsel %vm214, %v1690, 0
    %v1732 = vsel %vm214, %v1691, 0
    %v1735 = vsel %vm214, %v1692, 0
    %v1738 = vsel %vm214, %v1693, 0
    %v1741 = vsel %vm214, %v1694, 0
    %v1744 = vsel %vm214, %v1695, 0
    %v1747 = vsel %vm214, %v1696, 0
    %v1750 = vsel %vm214, %v1697, 0
    %v1753 = vsel %vm214, %v1698, 0
    %v1756 = vsel %vm214, %v1699, 0
    %v1759 = vsel %vm214, %v1700, 0
    %1761 = vmatprep.subr.bf16.mxu0 0
    %1762 = vmatpush1.bf16.msra.mxu0 %v1709
    %1763 = vmatprep.subr.bf16.mxu0 0
    %1764 = vmatpush1.bf16.msra.mxu0 %v1710
    %1765 = vmatprep.subr.bf16.mxu0 0
    %1766 = vmatpush1.bf16.msra.mxu0 0
    %1767 = vmatprep.subr.bf16.mxu0 0
    %1768 = vmatpush1.bf16.msra.mxu0 0
    %1769 = vmatprep.subr.bf16.mxu0 0
    %1770 = vmatpush1.bf16.msra.mxu0 0
    %1771 = vmatprep.subr.bf16.mxu0 0
    %1772 = vmatpush1.bf16.msra.mxu0 0
    %1773 = vmatprep.subr.bf16.mxu0 0
    %1774 = vmatpush1.bf16.msra.mxu0 0
    %1775 = vmatprep.subr.bf16.mxu0 0
    %1776 = vmatpush1.bf16.msra.mxu0 0
    %1777 = vmatprep.subr.bf16.mxu0 0
    %1778 = vmatpush1.bf16.msra.mxu0 0
    %1779 = vmatprep.subr.bf16.mxu0 0
    %1780 = vmatpush1.bf16.msra.mxu0 0
    %1781 = vmatprep.subr.bf16.mxu0 0
    %1782 = vmatpush1.bf16.msra.mxu0 0
    %1783 = vmatprep.subr.bf16.mxu0 0
    %1784 = vmatpush1.bf16.msra.mxu0 0
    %1785 = vmatprep.subr.bf16.mxu0 0
    %1786 = vmatpush1.bf16.msra.mxu0 0
    %1787 = vmatprep.subr.bf16.mxu0 0
    %1788 = vmatpush1.bf16.msra.mxu0 0
    %1789 = vmatprep.subr.bf16.mxu0 0
    %1790 = vmatpush1.bf16.msra.mxu0 0
    %1791 = vmatprep.subr.bf16.mxu0 0
    %1792 = vmatpush1.bf16.msra.mxu0 0
    %1793 = vmatprep.mubr.bf16.mxu0 0
    %1794 = vmatmul.mubr.bf16.gmra.mrb[0].mxu0 %v1714
    %v1795 = vpop.f32.mrb[0].mxu0
    %v1796 = vadd.f32 0.0, %v1795
    %v1797 = vpop.f32.mrb[0].mxu0
    %v1798 = vpop.f32.mrb[0].mxu0
    %v1799 = vadd.f32 0.0, %v1798
    %v1800 = vpop.f32.mrb[0].mxu0
    %1801 = vmatprep.mubr.bf16.mxu0 0
    %1802 = vmatmul.mubr.bf16.gmra.mrb[0].mxu0 %v1717
    %v1803 = vpop.f32.mrb[0].mxu0
    %v1804 = vadd.f32 0.0, %v1803
    %v1805 = vpop.f32.mrb[0].mxu0
    %v1806 = vpop.f32.mrb[0].mxu0
    %v1807 = vadd.f32 0.0, %v1806
    %v1808 = vpop.f32.mrb[0].mxu0
    %1809 = vmatprep.mubr.bf16.mxu0 0
    %1810 = vmatmul.mubr.bf16.gmra.mrb[0].mxu0 %v1720
    %v1811 = vpop.f32.mrb[0].mxu0
    %v1812 = vadd.f32 0.0, %v1811
    %v1813 = vpop.f32.mrb[0].mxu0
    %v1814 = vpop.f32.mrb[0].mxu0
    %v1815 = vadd.f32 0.0, %v1814
    %v1816 = vpop.f32.mrb[0].mxu0
    %1817 = vmatprep.mubr.bf16.mxu0 0
    %1818 = vmatmul.mubr.bf16.gmra.mrb[0].mxu0 %v1723
    %v1819 = vpop.f32.mrb[0].mxu0
    %v1820 = vadd.f32 0.0, %v1819
    %v1821 = vpop.f32.mrb[0].mxu0
    %v1822 = vpop.f32.mrb[0].mxu0
    %v1823 = vadd.f32 0.0, %v1822
    %v1824 = vpop.f32.mrb[0].mxu0
    %1825 = vmatprep.mubr.bf16.mxu0 0
    %1826 = vmatmul.mubr.bf16.gmra.mrb[0].mxu0 %v1726
    %v1827 = vpop.f32.mrb[0].mxu0
    %v1828 = vadd.f32 0.0, %v1827
    %v1829 = vpop.f32.mrb[0].mxu0
    %v1830 = vpop.f32.mrb[0].mxu0
    %v1831 = vadd.f32 0.0, %v1830
    %v1832 = vpop.f32.mrb[0].mxu0
    %1833 = vmatprep.mubr.bf16.mxu0 0
    %1834 = vmatmul.mubr.bf16.gmra.mrb[0].mxu0 %v1729
    %v1835 = vpop.f32.mrb[0].mxu0
    %v1836 = vadd.f32 0.0, %v1835
    %v1837 = vpop.f32.mrb[0].mxu0
    %v1838 = vpop.f32.mrb[0].mxu0
    %v1839 = vadd.f32 0.0, %v1838
    %v1840 = vpop.f32.mrb[0].mxu0
    %1841 = vmatprep.mubr.bf16.mxu0 0
    %1842 = vmatmul.mubr.bf16.gmra.mrb[0].mxu0 %v1732
    %v1843 = vpop.f32.mrb[0].mxu0
    %v1844 = vadd.f32 0.0, %v1843
    %v1845 = vpop.f32.mrb[0].mxu0
    %v1846 = vpop.f32.mrb[0].mxu0
    %v1847 = vadd.f32 0.0, %v1846
    %v1848 = vpop.f32.mrb[0].mxu0
    %1849 = vmatprep.mubr.bf16.mxu0 0
    %1850 = vmatmul.mubr.bf16.gmra.mrb[0].mxu0 %v1735
    %v1851 = vpop.f32.mrb[0].mxu0
    %v1852 = vadd.f32 0.0, %v1851
    %v1853 = vpop.f32.mrb[0].mxu0
    %v1854 = vpop.f32.mrb[0].mxu0
    %v1855 = vadd.f32 0.0, %v1854
    %v1856 = vpop.f32.mrb[0].mxu0
    %1857 = vmatprep.mubr.bf16.mxu0 0
    %1858 = vmatmul.mubr.bf16.gmra.mrb[0].mxu0 %v1738
    %v1859 = vpop.f32.mrb[0].mxu0
    %v1860 = vadd.f32 0.0, %v1859
    %v1861 = vpop.f32.mrb[0].mxu0
    %v1862 = vpop.f32.mrb[0].mxu0
    %v1863 = vadd.f32 0.0, %v1862
    %v1864 = vpop.f32.mrb[0].mxu0
    %1865 = vmatprep.mubr.bf16.mxu0 0
    %1866 = vmatmul.mubr.bf16.gmra.mrb[0].mxu0 %v1741
    %v1867 = vpop.f32.mrb[0].mxu0
    %v1868 = vadd.f32 0.0, %v1867
    %v1869 = vpop.f32.mrb[0].mxu0
    %v1870 = vpop.f32.mrb[0].mxu0
    %v1871 = vadd.f32 0.0, %v1870
    %v1872 = vpop.f32.mrb[0].mxu0
    %1873 = vmatprep.mubr.bf16.mxu0 0
    %1874 = vmatmul.mubr.bf16.gmra.mrb[0].mxu0 %v1744
    %v1875 = vpop.f32.mrb[0].mxu0
    %v1876 = vadd.f32 0.0, %v1875
    %v1877 = vpop.f32.mrb[0].mxu0
    %v1878 = vpop.f32.mrb[0].mxu0
    %v1879 = vadd.f32 0.0, %v1878
    %v1880 = vpop.f32.mrb[0].mxu0
    %1881 = vmatprep.mubr.bf16.mxu0 0
    %1882 = vmatmul.mubr.bf16.gmra.mrb[0].mxu0 %v1747
    %v1883 = vpop.f32.mrb[0].mxu0
    %v1884 = vadd.f32 0.0, %v1883
    %v1885 = vpop.f32.mrb[0].mxu0
    %v1886 = vpop.f32.mrb[0].mxu0
    %v1887 = vadd.f32 0.0, %v1886
    %v1888 = vpop.f32.mrb[0].mxu0
    %1889 = vmatprep.mubr.bf16.mxu0 0
    %1890 = vmatmul.mubr.bf16.gmra.mrb[0].mxu0 %v1750
    %v1891 = vpop.f32.mrb[0].mxu0
    %v1892 = vadd.f32 0.0, %v1891
    %v1893 = vpop.f32.mrb[0].mxu0
    %v1894 = vpop.f32.mrb[0].mxu0
    %v1895 = vadd.f32 0.0, %v1894
    %v1896 = vpop.f32.mrb[0].mxu0
    %1897 = vmatprep.mubr.bf16.mxu0 0
    %1898 = vmatmul.mubr.bf16.gmra.mrb[0].mxu0 %v1753
    %v1899 = vpop.f32.mrb[0].mxu0
    %v1900 = vadd.f32 0.0, %v1899
    %v1901 = vpop.f32.mrb[0].mxu0
    %v1902 = vpop.f32.mrb[0].mxu0
    %v1903 = vadd.f32 0.0, %v1902
    %v1904 = vpop.f32.mrb[0].mxu0
    %1905 = vmatprep.mubr.bf16.mxu0 0
    %1906 = vmatmul.mubr.bf16.gmra.mrb[0].mxu0 %v1756
    %v1907 = vpop.f32.mrb[0].mxu0
    %v1908 = vadd.f32 0.0, %v1907
    %v1909 = vpop.f32.mrb[0].mxu0
    %v1910 = vpop.f32.mrb[0].mxu0
    %v1911 = vadd.f32 0.0, %v1910
    %v1912 = vpop.f32.mrb[0].mxu0
    %1913 = vmatprep.mubr.bf16.mxu0 0
    %1914 = vmatmul.mubr.bf16.gmra.mrb[0].mxu0 %v1759
    %v1915 = vpop.f32.mrb[0].mxu0
    %v1916 = vadd.f32 0.0, %v1915
    %v1917 = vpop.f32.mrb[0].mxu0
    %v1918 = vpop.f32.mrb[0].mxu0
    %v1919 = vadd.f32 0.0, %v1918
    %v1920 = vpop.f32.mrb[0].mxu0
    %1921 = vdwg.mxu0
    %v1926 = vunpack.c.l.b16 %v1660
    %v1927 = vunpack.c.l.b16 %v1661
    %v1928 = vunpack.c.l.b16 %v1662
    %v1929 = vunpack.c.l.b16 %v1663
    %v1930 = vpack.c.b16 %v1927, %v1926
    %v1931 = vpack.c.b16 %v1929, %v1928
    %v1935 = vsel %vm214, %v1669, 0
    %v1938 = vsel %vm214, %v1670, 0
    %v1941 = vsel %vm214, %v1671, 0
    %v1944 = vsel %vm214, %v1672, 0
    %v1947 = vsel %vm214, %v1673, 0
    %v1950 = vsel %vm214, %v1674, 0
    %v1953 = vsel %vm214, %v1675, 0
    %v1956 = vsel %vm214, %v1676, 0
    %v1959 = vsel %vm214, %v1677, 0
    %v1962 = vsel %vm214, %v1678, 0
    %v1965 = vsel %vm214, %v1679, 0
    %v1968 = vsel %vm214, %v1680, 0
    %v1971 = vsel %vm214, %v1681, 0
    %v1974 = vsel %vm214, %v1682, 0
    %v1977 = vsel %vm214, %v1683, 0
    %v1980 = vsel %vm214, %v1684, 0
    %1982 = vmatprep.subr.bf16.mxu0 0
    %1983 = vmatpush1.bf16.msra.mxu0 %v1930
    %1984 = vmatprep.subr.bf16.mxu0 0
    %1985 = vmatpush1.bf16.msra.mxu0 %v1931
    %1986 = vmatprep.subr.bf16.mxu0 0
    %1987 = vmatpush1.bf16.msra.mxu0 0
    %1988 = vmatprep.subr.bf16.mxu0 0
    %1989 = vmatpush1.bf16.msra.mxu0 0
    %1990 = vmatprep.subr.bf16.mxu0 0
    %1991 = vmatpush1.bf16.msra.mxu0 0
    %1992 = vmatprep.subr.bf16.mxu0 0
    %1993 = vmatpush1.bf16.msra.mxu0 0
    %1994 = vmatprep.subr.bf16.mxu0 0
    %1995 = vmatpush1.bf16.msra.mxu0 0
    %1996 = vmatprep.subr.bf16.mxu0 0
    %1997 = vmatpush1.bf16.msra.mxu0 0
    %1998 = vmatprep.subr.bf16.mxu0 0
    %1999 = vmatpush1.bf16.msra.mxu0 0
    %2000 = vmatprep.subr.bf16.mxu0 0
    %2001 = vmatpush1.bf16.msra.mxu0 0
    %2002 = vmatprep.subr.bf16.mxu0 0
    %2003 = vmatpush1.bf16.msra.mxu0 0
    %2004 = vmatprep.subr.bf16.mxu0 0
    %2005 = vmatpush1.bf16.msra.mxu0 0
    %2006 = vmatprep.subr.bf16.mxu0 0
    %2007 = vmatpush1.bf16.msra.mxu0 0
    %2008 = vmatprep.subr.bf16.mxu0 0
    %2009 = vmatpush1.bf16.msra.mxu0 0
    %2010 = vmatprep.subr.bf16.mxu0 0
    %2011 = vmatpush1.bf16.msra.mxu0 0
    %2012 = vmatprep.subr.bf16.mxu0 0
    %2013 = vmatpush1.bf16.msra.mxu0 0
    %2014 = vmatprep.mubr.bf16.mxu0 0
    %2015 = vmatmul.mubr.bf16.gmra.mrb[0].mxu0 %v1935
    %v2016 = vpop.f32.mrb[0].mxu0
    %v2017 = vadd.f32 %v1796, %v2016
    %v2018 = vpop.f32.mrb[0].mxu0
    %v2019 = vpop.f32.mrb[0].mxu0
    %v2020 = vadd.f32 %v1799, %v2019
    %v2021 = vpop.f32.mrb[0].mxu0
    %2022 = vmatprep.mubr.bf16.mxu0 0
    %2023 = vmatmul.mubr.bf16.gmra.mrb[0].mxu0 %v1938
    %v2024 = vpop.f32.mrb[0].mxu0
    %v2025 = vadd.f32 %v1804, %v2024
    %v2026 = vpop.f32.mrb[0].mxu0
    %v2027 = vpop.f32.mrb[0].mxu0
    %v2028 = vadd.f32 %v1807, %v2027
    %v2029 = vpop.f32.mrb[0].mxu0
    %2030 = vmatprep.mubr.bf16.mxu0 0
    %2031 = vmatmul.mubr.bf16.gmra.mrb[0].mxu0 %v1941
    %v2032 = vpop.f32.mrb[0].mxu0
    %v2033 = vadd.f32 %v1812, %v2032
    %v2034 = vpop.f32.mrb[0].mxu0
    %v2035 = vpop.f32.mrb[0].mxu0
    %v2036 = vadd.f32 %v1815, %v2035
    %v2037 = vpop.f32.mrb[0].mxu0
    %2038 = vmatprep.mubr.bf16.mxu0 0
    %2039 = vmatmul.mubr.bf16.gmra.mrb[0].mxu0 %v1944
    %v2040 = vpop.f32.mrb[0].mxu0
    %v2041 = vadd.f32 %v1820, %v2040
    %v2042 = vpop.f32.mrb[0].mxu0
    %v2043 = vpop.f32.mrb[0].mxu0
    %v2044 = vadd.f32 %v1823, %v2043
    %v2045 = vpop.f32.mrb[0].mxu0
    %2046 = vmatprep.mubr.bf16.mxu0 0
    %2047 = vmatmul.mubr.bf16.gmra.mrb[0].mxu0 %v1947
    %v2048 = vpop.f32.mrb[0].mxu0
    %v2049 = vadd.f32 %v1828, %v2048
    %v2050 = vpop.f32.mrb[0].mxu0
    %v2051 = vpop.f32.mrb[0].mxu0
    %v2052 = vadd.f32 %v1831, %v2051
    %v2053 = vpop.f32.mrb[0].mxu0
    %2054 = vmatprep.mubr.bf16.mxu0 0
    %2055 = vmatmul.mubr.bf16.gmra.mrb[0].mxu0 %v1950
    %v2056 = vpop.f32.mrb[0].mxu0
    %v2057 = vadd.f32 %v1836, %v2056
    %v2058 = vpop.f32.mrb[0].mxu0
    %v2059 = vpop.f32.mrb[0].mxu0
    %v2060 = vadd.f32 %v1839, %v2059
    %v2061 = vpop.f32.mrb[0].mxu0
    %2062 = vmatprep.mubr.bf16.mxu0 0
    %2063 = vmatmul.mubr.bf16.gmra.mrb[0].mxu0 %v1953
    %v2064 = vpop.f32.mrb[0].mxu0
    %v2065 = vadd.f32 %v1844, %v2064
    %v2066 = vpop.f32.mrb[0].mxu0
    %v2067 = vpop.f32.mrb[0].mxu0
    %v2068 = vadd.f32 %v1847, %v2067
    %v2069 = vpop.f32.mrb[0].mxu0
    %2070 = vmatprep.mubr.bf16.mxu0 0
    %2071 = vmatmul.mubr.bf16.gmra.mrb[0].mxu0 %v1956
    %v2072 = vpop.f32.mrb[0].mxu0
    %v2073 = vadd.f32 %v1852, %v2072
    %v2074 = vpop.f32.mrb[0].mxu0
    %v2075 = vpop.f32.mrb[0].mxu0
    %v2076 = vadd.f32 %v1855, %v2075
    %v2077 = vpop.f32.mrb[0].mxu0
    %2078 = vmatprep.mubr.bf16.mxu0 0
    %2079 = vmatmul.mubr.bf16.gmra.mrb[0].mxu0 %v1959
    %v2080 = vpop.f32.mrb[0].mxu0
    %v2081 = vadd.f32 %v1860, %v2080
    %v2082 = vpop.f32.mrb[0].mxu0
    %v2083 = vpop.f32.mrb[0].mxu0
    %v2084 = vadd.f32 %v1863, %v2083
    %v2085 = vpop.f32.mrb[0].mxu0
    %2086 = vmatprep.mubr.bf16.mxu0 0
    %2087 = vmatmul.mubr.bf16.gmra.mrb[0].mxu0 %v1962
    %v2088 = vpop.f32.mrb[0].mxu0
    %v2089 = vadd.f32 %v1868, %v2088
    %v2090 = vpop.f32.mrb[0].mxu0
    %v2091 = vpop.f32.mrb[0].mxu0
    %v2092 = vadd.f32 %v1871, %v2091
    %v2093 = vpop.f32.mrb[0].mxu0
    %2094 = vmatprep.mubr.bf16.mxu0 0
    %2095 = vmatmul.mubr.bf16.gmra.mrb[0].mxu0 %v1965
    %v2096 = vpop.f32.mrb[0].mxu0
    %v2097 = vadd.f32 %v1876, %v2096
    %v2098 = vpop.f32.mrb[0].mxu0
    %v2099 = vpop.f32.mrb[0].mxu0
    %v2100 = vadd.f32 %v1879, %v2099
    %v2101 = vpop.f32.mrb[0].mxu0
    %2102 = vmatprep.mubr.bf16.mxu0 0
    %2103 = vmatmul.mubr.bf16.gmra.mrb[0].mxu0 %v1968
    %v2104 = vpop.f32.mrb[0].mxu0
    %v2105 = vadd.f32 %v1884, %v2104
    %v2106 = vpop.f32.mrb[0].mxu0
    %v2107 = vpop.f32.mrb[0].mxu0
    %v2108 = vadd.f32 %v1887, %v2107
    %v2109 = vpop.f32.mrb[0].mxu0
    %2110 = vmatprep.mubr.bf16.mxu0 0
    %2111 = vmatmul.mubr.bf16.gmra.mrb[0].mxu0 %v1971
    %v2112 = vpop.f32.mrb[0].mxu0
    %v2113 = vadd.f32 %v1892, %v2112
    %v2114 = vpop.f32.mrb[0].mxu0
    %v2115 = vpop.f32.mrb[0].mxu0
    %v2116 = vadd.f32 %v1895, %v2115
    %v2117 = vpop.f32.mrb[0].mxu0
    %2118 = vmatprep.mubr.bf16.mxu0 0
    %2119 = vmatmul.mubr.bf16.gmra.mrb[0].mxu0 %v1974
    %v2120 = vpop.f32.mrb[0].mxu0
    %v2121 = vadd.f32 %v1900, %v2120
    %v2122 = vpop.f32.mrb[0].mxu0
    %v2123 = vpop.f32.mrb[0].mxu0
    %v2124 = vadd.f32 %v1903, %v2123
    %v2125 = vpop.f32.mrb[0].mxu0
    %2126 = vmatprep.mubr.bf16.mxu0 0
    %2127 = vmatmul.mubr.bf16.gmra.mrb[0].mxu0 %v1977
    %v2128 = vpop.f32.mrb[0].mxu0
    %v2129 = vadd.f32 %v1908, %v2128
    %v2130 = vpop.f32.mrb[0].mxu0
    %v2131 = vpop.f32.mrb[0].mxu0
    %v2132 = vadd.f32 %v1911, %v2131
    %v2133 = vpop.f32.mrb[0].mxu0
    %2134 = vmatprep.mubr.bf16.mxu0 0
    %2135 = vmatmul.mubr.bf16.gmra.mrb[0].mxu0 %v1980
    %v2136 = vpop.f32.mrb[0].mxu0
    %v2137 = vadd.f32 %v1916, %v2136
    %v2138 = vpop.f32.mrb[0].mxu0
    %v2139 = vpop.f32.mrb[0].mxu0
    %v2140 = vadd.f32 %v1919, %v2139
    %v2141 = vpop.f32.mrb[0].mxu0
    %2142 = vdwg.mxu0
    %v2144 = vlaneseq
    %v2145 = vshrl.u32 %v2144, 7
    %v2146 = vsub.s32 0, %v2145
    %v2147 = vrot.slane %v1668, %v2146
    %v2149 = vadd.f32 %v2017, %v2147
    %v2150 = vadd.f32 %v2020, %v2147
    %v2151 = vadd.f32 %v2025, %v2147
    %v2152 = vadd.f32 %v2028, %v2147
    %v2153 = vadd.f32 %v2033, %v2147
    %v2154 = vadd.f32 %v2036, %v2147
    %v2155 = vadd.f32 %v2041, %v2147
    %v2156 = vadd.f32 %v2044, %v2147
    %v2157 = vadd.f32 %v2049, %v2147
    %v2158 = vadd.f32 %v2052, %v2147
    %v2159 = vadd.f32 %v2057, %v2147
    %v2160 = vadd.f32 %v2060, %v2147
    %v2161 = vadd.f32 %v2065, %v2147
    %v2162 = vadd.f32 %v2068, %v2147
    %v2163 = vadd.f32 %v2073, %v2147
    %v2164 = vadd.f32 %v2076, %v2147
    %v2165 = vadd.f32 %v2081, %v2147
    %v2166 = vadd.f32 %v2084, %v2147
    %v2167 = vadd.f32 %v2089, %v2147
    %v2168 = vadd.f32 %v2092, %v2147
    %v2169 = vadd.f32 %v2097, %v2147
    %v2170 = vadd.f32 %v2100, %v2147
    %v2171 = vadd.f32 %v2105, %v2147
    %v2172 = vadd.f32 %v2108, %v2147
    %v2173 = vadd.f32 %v2113, %v2147
    %v2174 = vadd.f32 %v2116, %v2147
    %v2175 = vadd.f32 %v2121, %v2147
    %v2176 = vadd.f32 %v2124, %v2147
    %v2177 = vadd.f32 %v2129, %v2147
    %v2178 = vadd.f32 %v2132, %v2147
    %v2179 = vadd.f32 %v2137, %v2147
    %v2180 = vadd.f32 %v2140, %v2147
    %2181 = vst [vmem:[#allocation2] sm:$0xff] %v2149
    %2182 = vst [vmem:[#allocation2 + $0x8] sm:$0xff] %v2150
    %2183 = vst [vmem:[#allocation2 + $0x10] sm:$0xff] %v2151
    %2184 = vst [vmem:[#allocation2 + $0x18] sm:$0xff] %v2152
    %2185 = vst [vmem:[#allocation2 + $0x20] sm:$0xff] %v2153
    %2186 = vst [vmem:[#allocation2 + $0x28] sm:$0xff] %v2154
    %2187 = vst [vmem:[#allocation2 + $0x30] sm:$0xff] %v2155
    %2188 = vst [vmem:[#allocation2 + $0x38] sm:$0xff] %v2156
    %2189 = vst [vmem:[#allocation2 + $0x40] sm:$0xff] %v2157
    %2190 = vst [vmem:[#allocation2 + $0x48] sm:$0xff] %v2158
    %2191 = vst [vmem:[#allocation2 + $0x50] sm:$0xff] %v2159
    %2192 = vst [vmem:[#allocation2 + $0x58] sm:$0xff] %v2160
    %2193 = vst [vmem:[#allocation2 + $0x60] sm:$0xff] %v2161
    %2194 = vst [vmem:[#allocation2 + $0x68] sm:$0xff] %v2162
    %2195 = vst [vmem:[#allocation2 + $0x70] sm:$0xff] %v2163
    %2196 = vst [vmem:[#allocation2 + $0x78] sm:$0xff] %v2164
    %2197 = vst [vmem:[#allocation2 + $0x80] sm:$0xff] %v2165
    %2198 = vst [vmem:[#allocation2 + $0x88] sm:$0xff] %v2166
    %2199 = vst [vmem:[#allocation2 + $0x90] sm:$0xff] %v2167
    %2200 = vst [vmem:[#allocation2 + $0x98] sm:$0xff] %v2168
    %2201 = vst [vmem:[#allocation2 + $0xa0] sm:$0xff] %v2169
    %2202 = vst [vmem:[#allocation2 + $0xa8] sm:$0xff] %v2170
    %2203 = vst [vmem:[#allocation2 + $0xb0] sm:$0xff] %v2171
    %2204 = vst [vmem:[#allocation2 + $0xb8] sm:$0xff] %v2172
    %2205 = vst [vmem:[#allocation2 + $0xc0] sm:$0xff] %v2173
    %2206 = vst [vmem:[#allocation2 + $0xc8] sm:$0xff] %v2174
    %2207 = vst [vmem:[#allocation2 + $0xd0] sm:$0xff] %v2175
    %2208 = vst [vmem:[#allocation2 + $0xd8] sm:$0xff] %v2176
    %2209 = vst [vmem:[#allocation2 + $0xe0] sm:$0xff] %v2177
    %2210 = vst [vmem:[#allocation2 + $0xe8] sm:$0xff] %v2178
    %2211 = vst [vmem:[#allocation2 + $0xf0] sm:$0xff] %v2179
    %2212 = vst [vmem:[#allocation2 + $0xf8] sm:$0xff] %v2180
    // Predicated region
    $region58: #{tpu_custom_call.1} parent=1 // pred_check
      _
    $region59: #{tpu_custom_call.1} parent=1 // pred_check_branch
      %2214 = sbr.rel (0) target = $region61
    $region60: #{tpu_custom_call.1} parent=1 // pred_region
      %s2216 = ssub.s32 4096, 4096
      %2217 = vsyncadd [#allocation3], %s2216
      %s2218 = sshll.u32 [#allocation2], 4
      %s2219 = int_to_ptr.vmem [resolvable:$true] %s2218
      %2224 = dma.vmem_to_hbm [thread:$0]  %s2219, 4096, %s14, [#allocation3], 128, 128, 8
    $region61: #{tpu_custom_call.1} parent=1 // pred_fallthru
      _
    // Predicated region
    $region62: #{tpu_custom_call.1} parent=1 // pred_check
      _
    $region63: #{tpu_custom_call.1} parent=1 // pred_check_branch
      %2226 = sbr.rel (0) target = $region65
    $region64: #{tpu_custom_call.1} parent=1 // pred_region
      %2227 = dma.done [#allocation3], 4096
    $region65: #{tpu_custom_call.1} parent=1 // pred_fallthru
      _
    %2228 = vsyncpa [#allocation3], 1

</llo_original>
